<compile_context>
chip_gen: v5e
topology: v5e:2x2
jax: 0.10.0
libtpu: 0.0.40
codegen_flags: <defaults>
</compile_context>

<pallas_src>
import functools
import math

import jax
import jax.numpy as jnp
from jax.experimental import pallas as pl
from jax.experimental.pallas import tpu as pltpu


# ----------------------------------------------------------------------------- config
CFG = dict(
    hidden=32,
    heads=4,
    layers=2,
    intermediate=64,
    vocab=30,
    max_pos=16,
    batch=2,
    seq=8,
    ln_eps=1e-12,
    mask_bias=-10000.0,
)
VOCAB_PAD = 128  # lane-dense padded vocab width for classifier / CE


# ----------------------------------------------------------------------------- helpers
def _full(shape):
    """BlockSpec covering the whole array as a single block (used with grid=(1,))."""
    return pl.BlockSpec(shape, lambda i, n=len(shape): (0,) * n)


def _layernorm(h, g, b, eps):
    mu = jnp.mean(h, axis=-1, keepdims=True)
    d = h - mu
    var = jnp.mean(d * d, axis=-1, keepdims=True)
    return d * jax.lax.rsqrt(var + eps) * g + b


def _gelu(x):
    # TODO(synk): HF BERT "gelu" is the exact erf form; tanh approximation used here
    #             (erf is not guaranteed to lower inside Mosaic).
    return 0.5 * x * (1.0 + jnp.tanh(0.7978845608028654 * (x + 0.044715 * x * x * x)))


# ----------------------------------------------------------------------------- encoder kernel
def _encoder_kernel(x_ref, bias_ref, embln_ref, wqkv_ref, bqkv_ref, wo_ref,
                    wi_ref, bi_ref, wf_ref, vecs_ref, o_ref, *, heads, eps):
    """One grid step == one full BERT encoder layer.  o_ref holds the running activation."""
    # Seed the resident activation with the embedding LayerNorm on the first layer.
    @pl.when(pl.program_id(0) == 0)
    def _():
        embln = embln_ref[...]
        o_ref[...] = _layernorm(x_ref[...], embln[0:1], embln[1:2], eps)

    x = o_ref[...]                                  # (M, H) f32 running activation
    m, hdim = x.shape
    d_head = hdim // heads

    vecs = vecs_ref[...]                            # (6, H) f32 packed per-layer vectors
    bo, ln1_g, ln1_b = vecs[0:1], vecs[1:2], vecs[2:3]
    b_ffn, ln2_g, ln2_b = vecs[3:4], vecs[4:5], vecs[5:6]

    xb = x.astype(jnp.bfloat16)
    # Fused full-width projections (scale already folded into Wq/bq at init).
    q = jnp.dot(xb, wqkv_ref[0], preferred_element_type=jnp.float32) + bqkv_ref[0]
    k = jnp.dot(xb, wqkv_ref[1], preferred_element_type=jnp.float32) + bqkv_ref[1]
    v = jnp.dot(xb, wqkv_ref[2], preferred_element_type=jnp.float32) + bqkv_ref[2]
    kb = k.astype(jnp.bfloat16)
    vb = v.astype(jnp.bfloat16)

    bias = bias_ref[...]                            # (M, M) additive block-diagonal mask
    col = jax.lax.broadcasted_iota(jnp.int32, (1, hdim), 1)

    # Heads separated with lane masks: the masked full-width contraction equals the per-head
    # (S, dH) score/context matmuls, but needs no sub-128 lane slices, concats, or scratch.
    ctx = jnp.zeros((m, hdim), jnp.float32)
    for h in range(heads):
        hmask = jnp.logical_and(col >= h * d_head, col < (h + 1) * d_head).astype(jnp.float32)
        qh = (q * hmask).astype(jnp.bfloat16)
        s = jnp.einsum('qc,kc->qk', qh, kb, preferred_element_type=jnp.float32) + bias
        s_max = jnp.max(s, axis=-1, keepdims=True)
        p = jnp.exp(s - s_max)
        p = p / jnp.sum(p, axis=-1, keepdims=True)          # exact division, f32
        ctx_h = jnp.einsum('qk,kc->qc', p.astype(jnp.bfloat16), vb,
                           preferred_element_type=jnp.float32)
        ctx = ctx + ctx_h * hmask

    # Single output-projection matmul over the concatenated heads.
    attn = jnp.dot(ctx.astype(jnp.bfloat16), wo_ref[...],
                   preferred_element_type=jnp.float32) + bo
    x1 = _layernorm(attn + x, ln1_g, ln1_b, eps)

    inter = _gelu(jnp.dot(x1.astype(jnp.bfloat16), wi_ref[...],
                          preferred_element_type=jnp.float32) + bi_ref[...])
    ffn = jnp.dot(inter.astype(jnp.bfloat16), wf_ref[...],
                  preferred_element_type=jnp.float32) + b_ffn
    o_ref[...] = _layernorm(ffn + x1, ln2_g, ln2_b, eps)


def bert_encoder(params, input_ids, attention_mask, cfg):
    B, S = input_ids.shape
    H, I, L = cfg["hidden"], cfg["intermediate"], cfg["layers"]
    M = B * S

    # Embedding gathers stay in XLA glue (data-dependent gather).
    we = params["word_emb"][input_ids]                         # [B,S,H]
    pe = params["pos_emb"][jnp.arange(S)][None, :, :]          # [1,S,H]
    te = params["type_emb"][0][None, None, :]                  # [1,1,H]
    x_emb = (we + pe + te).reshape(M, H).astype(jnp.float32)

    # Additive attention bias over all B*S tokens: block-diagonal batch structure plus the
    # HF-style (1 - mask) * -10000 key padding bias.  Cross-batch entries get -1e9 (exp -> 0).
    tok_b = jnp.repeat(jnp.arange(B), S)                       # (M,)
    same_batch = tok_b[:, None] == tok_b[None, :]              # (M, M)
    key_bias = (1.0 - attention_mask.reshape(-1).astype(jnp.float32)) * cfg["mask_bias"]
    attn_bias = jnp.where(same_batch, key_bias[None, :],
                          jnp.float32(-1e9)).astype(jnp.float32)

    kernel = functools.partial(_encoder_kernel, heads=cfg["heads"], eps=cfg["ln_eps"])
    return pl.pallas_call(
        kernel,
        out_shape=jax.ShapeDtypeStruct((M, H), jnp.float32),
        grid=(L,),
        in_specs=[
            pl.BlockSpec((M, H), lambda l: (0, 0)),                   # embeddings (resident)
            pl.BlockSpec((M, M), lambda l: (0, 0)),                   # additive attention bias
            pl.BlockSpec((2, H), lambda l: (0, 0)),                   # embedding LN [gamma; beta]
            pl.BlockSpec((None, 3, H, H), lambda l: (l, 0, 0, 0)),    # fused QKV weights (bf16)
            pl.BlockSpec((None, 3, 1, H), lambda l: (l, 0, 0, 0)),    # fused QKV biases
            pl.BlockSpec((None, H, H), lambda l: (l, 0, 0)),          # output projection (bf16)
            pl.BlockSpec((None, H, I), lambda l: (l, 0, 0)),          # FFN in weight (bf16)
            pl.BlockSpec((None, 1, I), lambda l: (l, 0, 0)),          # FFN in bias
            pl.BlockSpec((None, I, H), lambda l: (l, 0, 0)),          # FFN out weight (bf16)
            pl.BlockSpec((None, 6, H), lambda l: (l, 0, 0)),          # packed [bo,ln1g,ln1b,bf,ln2g,ln2b]
        ],
        out_specs=pl.BlockSpec((M, H), lambda l: (0, 0)),             # resident across layers
        compiler_params=pltpu.CompilerParams(dimension_semantics=("arbitrary",)),
    )(x_emb, attn_bias, params["emb_ln"],
      params["wqkv"], params["bqkv"], params["wo"],
      params["wi"], params["bi"], params["wf"], params["vecs"])


# ----------------------------------------------------------------------------- classifier kernels
def _cls_logits_kernel(x_ref, w_ref, b_ref, o_ref):
    o_ref[...] = (jnp.dot(x_ref[...].astype(jnp.bfloat16), w_ref[...],
                          preferred_element_type=jnp.float32) + b_ref[...])


def classify_logits(x, w_pad, b_pad):
    M, H = x.shape
    VP = w_pad.shape[1]
    return pl.pallas_call(
        _cls_logits_kernel,
        out_shape=jax.ShapeDtypeStruct((M, VP), jnp.float32),
        grid=(1,),
        in_specs=[_full((M, H)), _full((H, VP)), _full((1, VP))],
        out_specs=_full((M, VP)),             # lane-dense: VP is a multiple of 128
        compiler_params=pltpu.CompilerParams(dimension_semantics=("arbitrary",)),
    )(x, w_pad, b_pad)


def _cls_ce_kernel(x_ref, w_ref, b_ref, lbl_ref, loss_ref, *, vocab):
    """Fused classifier matmul + cross-entropy(ignore_index=0), reduced to one scalar."""
    logits = (jnp.dot(x_ref[...].astype(jnp.bfloat16), w_ref[...],
                      preferred_element_type=jnp.float32) + b_ref[...])    # (M, VP) f32
    m, vp = logits.shape
    col = jax.lax.broadcasted_iota(jnp.int32, (m, vp), 1)
    logits = jnp.where(col < vocab, logits, jnp.float32(-1e30))            # mask padded vocab cols

    labels = lbl_ref[...]                                                  # (M, 1) int32
    lmax = jnp.max(logits, axis=-1, keepdims=True)
    lse = jnp.log(jnp.sum(jnp.exp(logits - lmax), axis=-1, keepdims=True)) + lmax
    picked = jnp.sum(jnp.where(col == labels, logits, 0.0), axis=-1, keepdims=True)
    valid = (labels != 0).astype(jnp.float32)                              # ignore_index = 0
    per_tok = (lse - picked) * valid                                       # (M, 1)

    # In-kernel reduction to a single scalar (token-dim reduce done on the MXU).
    ones_row = jnp.ones((1, m), jnp.float32)
    total = jnp.dot(ones_row, per_tok, preferred_element_type=jnp.float32)  # (1, 1)
    count = jnp.dot(ones_row, valid, preferred_element_type=jnp.float32)    # (1, 1)
    loss_ref[...] = total / jnp.maximum(count, 1.0)


def classify_loss(x, w_pad, b_pad, labels_flat, vocab):
    M, H = x.shape
    VP = w_pad.shape[1]
    labels2d = labels_flat.reshape(M, 1).astype(jnp.int32)
    loss = pl.pallas_call(
        functools.partial(_cls_ce_kernel, vocab=vocab),
        out_shape=jax.ShapeDtypeStruct((1, 1), jnp.float32),
        grid=(1,),
        in_specs=[_full((M, H)), _full((H, VP)), _full((1, VP)), _full((M, 1))],
        out_specs=_full((1, 1)),
        compiler_params=pltpu.CompilerParams(dimension_semantics=("arbitrary",)),
    )(x, w_pad, b_pad, labels2d)
    return loss[0, 0]


# ----------------------------------------------------------------------------- params
def init_params(key, cfg):
    H, I, V, P, L = cfg["hidden"], cfg["intermediate"], cfg["vocab"], cfg["max_pos"], cfg["layers"]
    nH = cfg["heads"]
    dH = H // nH
    keys = iter(jax.random.split(key, 64))
    nrm = lambda shape: 0.02 * jax.random.normal(next(keys), shape, jnp.float32)
    zeros = lambda *s: jnp.zeros(s, jnp.float32)
    ones = lambda *s: jnp.ones(s, jnp.float32)
    scale = 1.0 / math.sqrt(dH)

    cls_w = nrm((H, V))
    params = dict(
        word_emb=nrm((V, H)),
        pos_emb=nrm((P, H)),
        type_emb=nrm((2, H)),
        emb_ln=jnp.concatenate([ones(1, H), zeros(1, H)], axis=0),          # [gamma; beta]
        # classifier padded to a lane-dense 128-wide vocab; weight stored bf16
        cls_w_pad=jnp.zeros((H, VOCAB_PAD), jnp.float32).at[:, :V].set(cls_w).astype(jnp.bfloat16),
        cls_b_pad=jnp.zeros((1, VOCAB_PAD), jnp.float32),
    )

    wqkv, bqkv, wo, wi, bi, wf, vecs = [], [], [], [], [], [], []
    for _ in range(L):
        wq, wk, wv = nrm((H, H)), nrm((H, H)), nrm((H, H))
        # attention scale folded into the Q projection (weight AND bias)
        wqkv.append(jnp.stack([wq * scale, wk, wv], axis=0))                # (3, H, H)
        bqkv.append(jnp.stack([zeros(1, H) * scale, zeros(1, H), zeros(1, H)], axis=0))
        wo.append(nrm((H, H)))
        wi.append(nrm((H, I)))
        bi.append(zeros(1, I))
        wf.append(nrm((I, H)))
        # packed per-layer H-wide vectors: [bo, ln1_g, ln1_b, bf, ln2_g, ln2_b]
        vecs.append(jnp.concatenate(
            [zeros(1, H), ones(1, H), zeros(1, H), zeros(1, H), ones(1, H), zeros(1, H)], axis=0))

    params.update(
        wqkv=jnp.stack(wqkv).astype(jnp.bfloat16),   # (L, 3, H, H) bf16
        bqkv=jnp.stack(bqkv),                        # (L, 3, 1, H) f32
        wo=jnp.stack(wo).astype(jnp.bfloat16),       # (L, H, H)   bf16
        wi=jnp.stack(wi).astype(jnp.bfloat16),       # (L, H, I)   bf16
        bi=jnp.stack(bi),                            # (L, 1, I)   f32
        wf=jnp.stack(wf).astype(jnp.bfloat16),       # (L, I, H)   bf16
        vecs=jnp.stack(vecs),                        # (L, 6, H)   f32
    )
    return params


# ----------------------------------------------------------------------------- forward
def language_model_forward(params, input_ids, attention_mask=None, labels=None, cfg=CFG):
    B, S = input_ids.shape
    V = cfg["vocab"]
    if attention_mask is None:
        attention_mask = jnp.ones((B, S), jnp.int32)
    seq_out = bert_encoder(params, input_ids, attention_mask, cfg)           # [B*S, H]
    if labels is not None:
        return classify_loss(seq_out, params["cls_w_pad"], params["cls_b_pad"],
                             labels.reshape(-1), V)
    logits_pad = classify_logits(seq_out, params["cls_w_pad"], params["cls_b_pad"])
    return logits_pad[:, :V].reshape(B, S, V)


# ----------------------------------------------------------------------------- main
if __name__ == "__main__":
    B, S, V = CFG["batch"], CFG["seq"], CFG["vocab"]
    key = jax.random.PRNGKey(0)
    k_ids, k_lbl, k_par = jax.random.split(key, 3)

    input_ids = jax.random.randint(k_ids, (B, S), 1, V).astype(jnp.int32)
    attention_mask = jnp.ones((B, S), jnp.int32).at[1, 6:].set(0)            # some padding
    labels = jax.random.randint(k_lbl, (B, S), 0, V).astype(jnp.int32)

    params = init_params(k_par, CFG)

    logits_fn = jax.jit(lambda p, ids, m: language_model_forward(p, ids, m))
    loss_fn = jax.jit(lambda p, ids, m, y: language_model_forward(p, ids, m, y))

    logits = logits_fn(params, input_ids, attention_mask)                    # labels=None path
    loss = loss_fn(params, input_ids, attention_mask, labels)                # loss path
    jax.block_until_ready((logits, loss))

    assert logits.shape == (B, S, V)
    assert bool(jnp.all(jnp.isfinite(logits)))
    assert bool(jnp.isfinite(loss))
    print("KERNEL_OK")
</pallas_src>

<mosaic_0001>
module attributes {stable_mosaic.version = 11 : i64} {
  func.func @_cls_logits_kernel(%arg0: i32, %arg1: memref<16x32xf32, #tpu.memory_space<vmem>>, %arg2: memref<32x128xbf16, #tpu.memory_space<vmem>>, %arg3: memref<1x128xf32, #tpu.memory_space<vmem>>, %arg4: memref<16x128xf32, #tpu.memory_space<vmem>>) attributes {dimension_semantics = [#tpu.dimension_semantics<arbitrary>], iteration_bounds = array<i64: 1>, scalar_prefetch = 0 : i64, scratch_operands = 0 : i64, tpu.core_type = #tpu.core_type<tc>, window_params = [{pipeline_mode = #tpu.pipeline_mode<synchronous>, transform_indices = @transform_0, window_bounds = array<i64: 16, 32>}, {pipeline_mode = #tpu.pipeline_mode<synchronous>, transform_indices = @transform_1, window_bounds = array<i64: 32, 128>}, {pipeline_mode = #tpu.pipeline_mode<synchronous>, transform_indices = @transform_2, window_bounds = array<i64: 1, 128>}, {pipeline_mode = #tpu.pipeline_mode<synchronous>, transform_indices = @transform_3, window_bounds = array<i64: 16, 128>}]} {
    %c0 = arith.constant 0 : index
    %c0_0 = arith.constant 0 : index
    %0 = vector.load %arg1[%c0, %c0_0] : memref<16x32xf32, #tpu.memory_space<vmem>>, vector<16x32xf32>
    %1 = arith.truncf %0 : vector<16x32xf32> to vector<16x32xbf16>
    %c0_1 = arith.constant 0 : index
    %c0_2 = arith.constant 0 : index
    %2 = vector.load %arg2[%c0_1, %c0_2] : memref<32x128xbf16, #tpu.memory_space<vmem>>, vector<32x128xbf16>
    %cst = arith.constant dense<0.000000e+00> : vector<16x128xf32>
    %3 = tpu.matmul %1, %2, %cst {dimension_numbers = #tpu.dot_dimension_numbers<[1], [0], [0], [1], [0, 0, 1, 1], [], []>} : vector<16x32xbf16>, vector<32x128xbf16>, vector<16x128xf32> -> vector<16x128xf32>
    %c0_3 = arith.constant 0 : index
    %c0_4 = arith.constant 0 : index
    %4 = vector.load %arg3[%c0_3, %c0_4] : memref<1x128xf32, #tpu.memory_space<vmem>>, vector<1x128xf32>
    %5 = vector.broadcast %4 : vector<1x128xf32> to vector<16x128xf32>
    %6 = arith.addf %3, %5 : vector<16x128xf32>
    %c0_5 = arith.constant 0 : index
    %c0_6 = arith.constant 0 : index
    %7 = vector.load %arg4[%c0_5, %c0_6] : memref<16x128xf32, #tpu.memory_space<vmem>>, vector<16x128xf32>
    tpu.vector_store %arg4[%c0_5, %c0_6], %6 {strides = array<i32>} : memref<16x128xf32, #tpu.memory_space<vmem>>, vector<16x128xf32>,
    return
  }
  func.func @transform_0(%arg0: i32) -> (i32, i32) {
    %c0_i32 = arith.constant 0 : i32
    %c0_i32_0 = arith.constant 0 : i32
    %c0_i32_1 = arith.constant 0 : i32
    return %c0_i32, %c0_i32_0 : i32, i32
  }
  func.func @transform_1(%arg0: i32) -> (i32, i32) {
    %c0_i32 = arith.constant 0 : i32
    %c0_i32_0 = arith.constant 0 : i32
    %c0_i32_1 = arith.constant 0 : i32
    return %c0_i32, %c0_i32_0 : i32, i32
  }
  func.func @transform_2(%arg0: i32) -> (i32, i32) {
    %c0_i32 = arith.constant 0 : i32
    %c0_i32_0 = arith.constant 0 : i32
    %c0_i32_1 = arith.constant 0 : i32
    return %c0_i32, %c0_i32_0 : i32, i32
  }
  func.func @transform_3(%arg0: i32) -> (i32, i32) {
    %c0_i32 = arith.constant 0 : i32
    %c0_i32_0 = arith.constant 0 : i32
    %c0_i32_1 = arith.constant 0 : i32
    return %c0_i32, %c0_i32_0 : i32, i32
  }
}

module attributes {stable_mosaic.version = 11 : i64} {
  func.func @_encoder_kernel(%arg0: i32, %arg1: memref<16x32xf32, #tpu.memory_space<vmem>>, %arg2: memref<16x16xf32, #tpu.memory_space<vmem>>, %arg3: memref<2x32xf32, #tpu.memory_space<vmem>>, %arg4: memref<1x3x32x32xbf16, #tpu.memory_space<vmem>>, %arg5: memref<1x3x1x32xf32, #tpu.memory_space<vmem>>, %arg6: memref<1x32x32xbf16, #tpu.memory_space<vmem>>, %arg7: memref<1x32x64xbf16, #tpu.memory_space<vmem>>, %arg8: memref<1x1x64xf32, #tpu.memory_space<vmem>>, %arg9: memref<1x64x32xbf16, #tpu.memory_space<vmem>>, %arg10: memref<1x6x32xf32, #tpu.memory_space<vmem>>, %arg11: memref<16x32xf32, #tpu.memory_space<vmem>>) attributes {dimension_semantics = [#tpu.dimension_semantics<arbitrary>], iteration_bounds = array<i64: 2>, scalar_prefetch = 0 : i64, scratch_operands = 0 : i64, tpu.core_type = #tpu.core_type<tc>, window_params = [{pipeline_mode = #tpu.pipeline_mode<synchronous>, transform_indices = @transform_0, window_bounds = array<i64: 16, 32>}, {pipeline_mode = #tpu.pipeline_mode<synchronous>, transform_indices = @transform_1, window_bounds = array<i64: 16, 16>}, {pipeline_mode = #tpu.pipeline_mode<synchronous>, transform_indices = @transform_2, window_bounds = array<i64: 2, 32>}, {transform_indices = @transform_3, window_bounds = array<i64: 1, 3, 32, 32>}, {transform_indices = @transform_4, window_bounds = array<i64: 1, 3, 1, 32>}, {transform_indices = @transform_5, window_bounds = array<i64: 1, 32, 32>}, {transform_indices = @transform_6, window_bounds = array<i64: 1, 32, 64>}, {transform_indices = @transform_7, window_bounds = array<i64: 1, 1, 64>}, {transform_indices = @transform_8, window_bounds = array<i64: 1, 64, 32>}, {transform_indices = @transform_9, window_bounds = array<i64: 1, 6, 32>}, {pipeline_mode = #tpu.pipeline_mode<synchronous>, transform_indices = @transform_10, window_bounds = array<i64: 16, 32>}]} {
    %c0_i32 = arith.constant 0 : i32
    %0 = arith.cmpi eq, %arg0, %c0_i32 : i32
    %1 = arith.extui %0 : i1 to i32
    %c0_i32_0 = arith.constant 0 : i32
    %2 = arith.cmpi ne, %1, %c0_i32_0 : i32
    scf.if %2 {
      %c0_83 = arith.constant 0 : index
      %c0_84 = arith.constant 0 : index
      %219 = vector.load %arg3[%c0_83, %c0_84] : memref<2x32xf32, #tpu.memory_space<vmem>>, vector<2x32xf32>
      %c0_85 = arith.constant 0 : index
      %c0_86 = arith.constant 0 : index
      %220 = vector.load %arg1[%c0_85, %c0_86] : memref<16x32xf32, #tpu.memory_space<vmem>>, vector<16x32xf32>
      %221 = vector.extract_strided_slice %219 {offsets = [0, 0], sizes = [1, 32], strides = [1, 1]} : vector<2x32xf32> to vector<1x32xf32>
      %222 = vector.extract_strided_slice %219 {offsets = [1, 0], sizes = [1, 32], strides = [1, 1]} : vector<2x32xf32> to vector<1x32xf32>
      %cst_87 = arith.constant dense<0.000000e+00> : vector<16xf32>
      %223 = vector.multi_reduction <add>, %220, %cst_87 [1] : vector<16x32xf32> to vector<16xf32>
      %224 = vector.shape_cast %223 : vector<16xf32> to vector<16x1xf32>
      %cst_88 = arith.constant 3.200000e+01 : f32
      %225 = vector.broadcast %cst_88 : f32 to vector<16x1xf32>
      %226 = arith.divf %224, %225 : vector<16x1xf32>
      %227 = vector.broadcast %226 : vector<16x1xf32> to vector<16x32xf32>
      %228 = arith.subf %220, %227 : vector<16x32xf32>
      %229 = arith.mulf %228, %228 : vector<16x32xf32>
      %cst_89 = arith.constant dense<0.000000e+00> : vector<16xf32>
      %230 = vector.multi_reduction <add>, %229, %cst_89 [1] : vector<16x32xf32> to vector<16xf32>
      %231 = vector.shape_cast %230 : vector<16xf32> to vector<16x1xf32>
      %cst_90 = arith.constant 3.200000e+01 : f32
      %232 = vector.broadcast %cst_90 : f32 to vector<16x1xf32>
      %233 = arith.divf %231, %232 : vector<16x1xf32>
      %cst_91 = arith.constant 9.99999996E-13 : f32
      %234 = vector.broadcast %cst_91 : f32 to vector<16x1xf32>
      %235 = arith.addf %233, %234 : vector<16x1xf32>
      %236 = math.rsqrt %235 : vector<16x1xf32>
      %237 = vector.broadcast %236 : vector<16x1xf32> to vector<16x32xf32>
      %238 = arith.mulf %228, %237 : vector<16x32xf32>
      %239 = vector.broadcast %221 : vector<1x32xf32> to vector<16x32xf32>
      %240 = arith.mulf %238, %239 : vector<16x32xf32>
      %241 = vector.broadcast %222 : vector<1x32xf32> to vector<16x32xf32>
      %242 = arith.addf %240, %241 : vector<16x32xf32>
      %c0_92 = arith.constant 0 : index
      %c0_93 = arith.constant 0 : index
      %243 = vector.load %arg11[%c0_92, %c0_93] : memref<16x32xf32, #tpu.memory_space<vmem>>, vector<16x32xf32>
      tpu.vector_store %arg11[%c0_92, %c0_93], %242 {strides = array<i32>} : memref<16x32xf32, #tpu.memory_space<vmem>>, vector<16x32xf32>,
    } else {
    }
    %c0 = arith.constant 0 : index
    %c0_1 = arith.constant 0 : index
    %3 = vector.load %arg11[%c0, %c0_1] : memref<16x32xf32, #tpu.memory_space<vmem>>, vector<16x32xf32>
    %c0_2 = arith.constant 0 : index
    %c0_3 = arith.constant 0 : index
    %c0_4 = arith.constant 0 : index
    %4 = vector.load %arg10[%c0_2, %c0_3, %c0_4] : memref<1x6x32xf32, #tpu.memory_space<vmem>>, vector<1x6x32xf32>
    %5 = vector.shape_cast %4 : vector<1x6x32xf32> to vector<6x32xf32>
    %6 = vector.extract_strided_slice %5 {offsets = [0, 0], sizes = [1, 32], strides = [1, 1]} : vector<6x32xf32> to vector<1x32xf32>
    %7 = vector.extract_strided_slice %5 {offsets = [1, 0], sizes = [1, 32], strides = [1, 1]} : vector<6x32xf32> to vector<1x32xf32>
    %8 = vector.extract_strided_slice %5 {offsets = [2, 0], sizes = [1, 32], strides = [1, 1]} : vector<6x32xf32> to vector<1x32xf32>
    %9 = vector.extract_strided_slice %5 {offsets = [3, 0], sizes = [1, 32], strides = [1, 1]} : vector<6x32xf32> to vector<1x32xf32>
    %10 = vector.extract_strided_slice %5 {offsets = [4, 0], sizes = [1, 32], strides = [1, 1]} : vector<6x32xf32> to vector<1x32xf32>
    %11 = vector.extract_strided_slice %5 {offsets = [5, 0], sizes = [1, 32], strides = [1, 1]} : vector<6x32xf32> to vector<1x32xf32>
    %12 = arith.truncf %3 : vector<16x32xf32> to vector<16x32xbf16>
    %c0_5 = arith.constant 0 : index
    %c0_6 = arith.constant 0 : index
    %c0_7 = arith.constant 0 : index
    %c0_8 = arith.constant 0 : index
    %13 = vector.load %arg4[%c0_5, %c0_6, %c0_7, %c0_8] : memref<1x3x32x32xbf16, #tpu.memory_space<vmem>>, vector<1x1x32x32xbf16>
    %14 = vector.shape_cast %13 : vector<1x1x32x32xbf16> to vector<32x32xbf16>
    %cst = arith.constant dense<0.000000e+00> : vector<16x32xf32>
    %15 = tpu.matmul %12, %14, %cst {dimension_numbers = #tpu.dot_dimension_numbers<[1], [0], [0], [1], [0, 0, 1, 1], [], []>} : vector<16x32xbf16>, vector<32x32xbf16>, vector<16x32xf32> -> vector<16x32xf32>
    %c0_9 = arith.constant 0 : index
    %c0_10 = arith.constant 0 : index
    %c0_11 = arith.constant 0 : index
    %c0_12 = arith.constant 0 : index
    %16 = vector.load %arg5[%c0_9, %c0_10, %c0_11, %c0_12] : memref<1x3x1x32xf32, #tpu.memory_space<vmem>>, vector<1x1x1x32xf32>
    %17 = vector.shape_cast %16 : vector<1x1x1x32xf32> to vector<1x32xf32>
    %18 = vector.broadcast %17 : vector<1x32xf32> to vector<16x32xf32>
    %19 = arith.addf %15, %18 : vector<16x32xf32>
    %c0_13 = arith.constant 0 : index
    %c1 = arith.constant 1 : index
    %c0_14 = arith.constant 0 : index
    %c0_15 = arith.constant 0 : index
    %20 = vector.load %arg4[%c0_13, %c1, %c0_14, %c0_15] : memref<1x3x32x32xbf16, #tpu.memory_space<vmem>>, vector<1x1x32x32xbf16>
    %21 = vector.shape_cast %20 : vector<1x1x32x32xbf16> to vector<32x32xbf16>
    %cst_16 = arith.constant dense<0.000000e+00> : vector<16x32xf32>
    %22 = tpu.matmul %12, %21, %cst_16 {dimension_numbers = #tpu.dot_dimension_numbers<[1], [0], [0], [1], [0, 0, 1, 1], [], []>} : vector<16x32xbf16>, vector<32x32xbf16>, vector<16x32xf32> -> vector<16x32xf32>
    %c0_17 = arith.constant 0 : index
    %c1_18 = arith.constant 1 : index
    %c0_19 = arith.constant 0 : index
    %c0_20 = arith.constant 0 : index
    %23 = vector.load %arg5[%c0_17, %c1_18, %c0_19, %c0_20] : memref<1x3x1x32xf32, #tpu.memory_space<vmem>>, vector<1x1x1x32xf32>
    %24 = vector.shape_cast %23 : vector<1x1x1x32xf32> to vector<1x32xf32>
    %25 = vector.broadcast %24 : vector<1x32xf32> to vector<16x32xf32>
    %26 = arith.addf %22, %25 : vector<16x32xf32>
    %c0_21 = arith.constant 0 : index
    %c2 = arith.constant 2 : index
    %c0_22 = arith.constant 0 : index
    %c0_23 = arith.constant 0 : index
    %27 = vector.load %arg4[%c0_21, %c2, %c0_22, %c0_23] : memref<1x3x32x32xbf16, #tpu.memory_space<vmem>>, vector<1x1x32x32xbf16>
    %28 = vector.shape_cast %27 : vector<1x1x32x32xbf16> to vector<32x32xbf16>
    %cst_24 = arith.constant dense<0.000000e+00> : vector<16x32xf32>
    %29 = tpu.matmul %12, %28, %cst_24 {dimension_numbers = #tpu.dot_dimension_numbers<[1], [0], [0], [1], [0, 0, 1, 1], [], []>} : vector<16x32xbf16>, vector<32x32xbf16>, vector<16x32xf32> -> vector<16x32xf32>
    %c0_25 = arith.constant 0 : index
    %c2_26 = arith.constant 2 : index
    %c0_27 = arith.constant 0 : index
    %c0_28 = arith.constant 0 : index
    %30 = vector.load %arg5[%c0_25, %c2_26, %c0_27, %c0_28] : memref<1x3x1x32xf32, #tpu.memory_space<vmem>>, vector<1x1x1x32xf32>
    %31 = vector.shape_cast %30 : vector<1x1x1x32xf32> to vector<1x32xf32>
    %32 = vector.broadcast %31 : vector<1x32xf32> to vector<16x32xf32>
    %33 = arith.addf %29, %32 : vector<16x32xf32>
    %34 = arith.truncf %26 : vector<16x32xf32> to vector<16x32xbf16>
    %35 = arith.truncf %33 : vector<16x32xf32> to vector<16x32xbf16>
    %c0_29 = arith.constant 0 : index
    %c0_30 = arith.constant 0 : index
    %36 = vector.load %arg2[%c0_29, %c0_30] : memref<16x16xf32, #tpu.memory_space<vmem>>, vector<16x16xf32>
    %37 = tpu.iota {dimensions = array<i32: 1>} : vector<1x32xi32>
    %cst_31 = arith.constant 0.000000e+00 : f32
    %38 = vector.broadcast %cst_31 : f32 to vector<16x32xf32>
    %c0_i32_32 = arith.constant 0 : i32
    %39 = vector.broadcast %c0_i32_32 : i32 to vector<1x32xi32>
    %40 = arith.cmpi sge, %37, %39 : vector<1x32xi32>
    %c8_i32 = arith.constant 8 : i32
    %41 = vector.broadcast %c8_i32 : i32 to vector<1x32xi32>
    %42 = arith.cmpi slt, %37, %41 : vector<1x32xi32>
    %43 = arith.andi %40, %42 : vector<1x32xi1>
    %44 = arith.extui %43 : vector<1x32xi1> to vector<1x32xi32>
    %45 = arith.sitofp %44 : vector<1x32xi32> to vector<1x32xf32>
    %46 = vector.broadcast %45 : vector<1x32xf32> to vector<16x32xf32>
    %47 = arith.mulf %19, %46 : vector<16x32xf32>
    %48 = arith.truncf %47 : vector<16x32xf32> to vector<16x32xbf16>
    "tpu.trace_start"() <{level = 10 : i32, message = "qc,kc->qk"}> : () -> ()
    %cst_33 = arith.constant dense<0.000000e+00> : vector<16x16xf32>
    %49 = tpu.matmul %48, %34, %cst_33 {dimension_numbers = #tpu.dot_dimension_numbers<[1], [1], [0], [0], [0, 0, 1, 0], [], []>} : vector<16x32xbf16>, vector<16x32xbf16>, vector<16x16xf32> -> vector<16x16xf32>
    "tpu.trace_stop"() : () -> ()
    %50 = arith.addf %49, %36 : vector<16x16xf32>
    %cst_34 = arith.constant dense<0xFF800000> : vector<16xf32>
    %51 = vector.multi_reduction <maximumf>, %50, %cst_34 [1] : vector<16x16xf32> to vector<16xf32>
    %52 = vector.shape_cast %51 : vector<16xf32> to vector<16x1xf32>
    %53 = vector.broadcast %52 : vector<16x1xf32> to vector<16x16xf32>
    %54 = arith.subf %50, %53 : vector<16x16xf32>
    %55 = math.exp %54 : vector<16x16xf32>
    %cst_35 = arith.constant dense<0.000000e+00> : vector<16xf32>
    %56 = vector.multi_reduction <add>, %55, %cst_35 [1] : vector<16x16xf32> to vector<16xf32>
    %57 = vector.shape_cast %56 : vector<16xf32> to vector<16x1xf32>
    %58 = vector.broadcast %57 : vector<16x1xf32> to vector<16x16xf32>
    %59 = arith.divf %55, %58 : vector<16x16xf32>
    %60 = arith.truncf %59 : vector<16x16xf32> to vector<16x16xbf16>
    "tpu.trace_start"() <{level = 10 : i32, message = "qk,kc->qc"}> : () -> ()
    %cst_36 = arith.constant dense<0.000000e+00> : vector<16x32xf32>
    %61 = tpu.matmul %60, %35, %cst_36 {dimension_numbers = #tpu.dot_dimension_numbers<[1], [0], [0], [1], [0, 0, 1, 1], [], []>} : vector<16x16xbf16>, vector<16x32xbf16>, vector<16x32xf32> -> vector<16x32xf32>
    "tpu.trace_stop"() : () -> ()
    %62 = vector.broadcast %45 : vector<1x32xf32> to vector<16x32xf32>
    %63 = arith.mulf %61, %62 : vector<16x32xf32>
    %64 = arith.addf %38, %63 : vector<16x32xf32>
    %c8_i32_37 = arith.constant 8 : i32
    %65 = vector.broadcast %c8_i32_37 : i32 to vector<1x32xi32>
    %66 = arith.cmpi sge, %37, %65 : vector<1x32xi32>
    %c16_i32 = arith.constant 16 : i32
    %67 = vector.broadcast %c16_i32 : i32 to vector<1x32xi32>
    %68 = arith.cmpi slt, %37, %67 : vector<1x32xi32>
    %69 = arith.andi %66, %68 : vector<1x32xi1>
    %70 = arith.extui %69 : vector<1x32xi1> to vector<1x32xi32>
    %71 = arith.sitofp %70 : vector<1x32xi32> to vector<1x32xf32>
    %72 = vector.broadcast %71 : vector<1x32xf32> to vector<16x32xf32>
    %73 = arith.mulf %19, %72 : vector<16x32xf32>
    %74 = arith.truncf %73 : vector<16x32xf32> to vector<16x32xbf16>
    "tpu.trace_start"() <{level = 10 : i32, message = "qc,kc->qk"}> : () -> ()
    %cst_38 = arith.constant dense<0.000000e+00> : vector<16x16xf32>
    %75 = tpu.matmul %74, %34, %cst_38 {dimension_numbers = #tpu.dot_dimension_numbers<[1], [1], [0], [0], [0, 0, 1, 0], [], []>} : vector<16x32xbf16>, vector<16x32xbf16>, vector<16x16xf32> -> vector<16x16xf32>
    "tpu.trace_stop"() : () -> ()
    %76 = arith.addf %75, %36 : vector<16x16xf32>
    %cst_39 = arith.constant dense<0xFF800000> : vector<16xf32>
    %77 = vector.multi_reduction <maximumf>, %76, %cst_39 [1] : vector<16x16xf32> to vector<16xf32>
    %78 = vector.shape_cast %77 : vector<16xf32> to vector<16x1xf32>
    %79 = vector.broadcast %78 : vector<16x1xf32> to vector<16x16xf32>
    %80 = arith.subf %76, %79 : vector<16x16xf32>
    %81 = math.exp %80 : vector<16x16xf32>
    %cst_40 = arith.constant dense<0.000000e+00> : vector<16xf32>
    %82 = vector.multi_reduction <add>, %81, %cst_40 [1] : vector<16x16xf32> to vector<16xf32>
    %83 = vector.shape_cast %82 : vector<16xf32> to vector<16x1xf32>
    %84 = vector.broadcast %83 : vector<16x1xf32> to vector<16x16xf32>
    %85 = arith.divf %81, %84 : vector<16x16xf32>
    %86 = arith.truncf %85 : vector<16x16xf32> to vector<16x16xbf16>
    "tpu.trace_start"() <{level = 10 : i32, message = "qk,kc->qc"}> : () -> ()
    %cst_41 = arith.constant dense<0.000000e+00> : vector<16x32xf32>
    %87 = tpu.matmul %86, %35, %cst_41 {dimension_numbers = #tpu.dot_dimension_numbers<[1], [0], [0], [1], [0, 0, 1, 1], [], []>} : vector<16x16xbf16>, vector<16x32xbf16>, vector<16x32xf32> -> vector<16x32xf32>
    "tpu.trace_stop"() : () -> ()
    %88 = vector.broadcast %71 : vector<1x32xf32> to vector<16x32xf32>
    %89 = arith.mulf %87, %88 : vector<16x32xf32>
    %90 = arith.addf %64, %89 : vector<16x32xf32>
    %c16_i32_42 = arith.constant 16 : i32
    %91 = vector.broadcast %c16_i32_42 : i32 to vector<1x32xi32>
    %92 = arith.cmpi sge, %37, %91 : vector<1x32xi32>
    %c24_i32 = arith.constant 24 : i32
    %93 = vector.broadcast %c24_i32 : i32 to vector<1x32xi32>
    %94 = arith.cmpi slt, %37, %93 : vector<1x32xi32>
    %95 = arith.andi %92, %94 : vector<1x32xi1>
    %96 = arith.extui %95 : vector<1x32xi1> to vector<1x32xi32>
    %97 = arith.sitofp %96 : vector<1x32xi32> to vector<1x32xf32>
    %98 = vector.broadcast %97 : vector<1x32xf32> to vector<16x32xf32>
    %99 = arith.mulf %19, %98 : vector<16x32xf32>
    %100 = arith.truncf %99 : vector<16x32xf32> to vector<16x32xbf16>
    "tpu.trace_start"() <{level = 10 : i32, message = "qc,kc->qk"}> : () -> ()
    %cst_43 = arith.constant dense<0.000000e+00> : vector<16x16xf32>
    %101 = tpu.matmul %100, %34, %cst_43 {dimension_numbers = #tpu.dot_dimension_numbers<[1], [1], [0], [0], [0, 0, 1, 0], [], []>} : vector<16x32xbf16>, vector<16x32xbf16>, vector<16x16xf32> -> vector<16x16xf32>
    "tpu.trace_stop"() : () -> ()
    %102 = arith.addf %101, %36 : vector<16x16xf32>
    %cst_44 = arith.constant dense<0xFF800000> : vector<16xf32>
    %103 = vector.multi_reduction <maximumf>, %102, %cst_44 [1] : vector<16x16xf32> to vector<16xf32>
    %104 = vector.shape_cast %103 : vector<16xf32> to vector<16x1xf32>
    %105 = vector.broadcast %104 : vector<16x1xf32> to vector<16x16xf32>
    %106 = arith.subf %102, %105 : vector<16x16xf32>
    %107 = math.exp %106 : vector<16x16xf32>
    %cst_45 = arith.constant dense<0.000000e+00> : vector<16xf32>
    %108 = vector.multi_reduction <add>, %107, %cst_45 [1] : vector<16x16xf32> to vector<16xf32>
    %109 = vector.shape_cast %108 : vector<16xf32> to vector<16x1xf32>
    %110 = vector.broadcast %109 : vector<16x1xf32> to vector<16x16xf32>
    %111 = arith.divf %107, %110 : vector<16x16xf32>
    %112 = arith.truncf %111 : vector<16x16xf32> to vector<16x16xbf16>
    "tpu.trace_start"() <{level = 10 : i32, message = "qk,kc->qc"}> : () -> ()
    %cst_46 = arith.constant dense<0.000000e+00> : vector<16x32xf32>
    %113 = tpu.matmul %112, %35, %cst_46 {dimension_numbers = #tpu.dot_dimension_numbers<[1], [0], [0], [1], [0, 0, 1, 1], [], []>} : vector<16x16xbf16>, vector<16x32xbf16>, vector<16x32xf32> -> vector<16x32xf32>
    "tpu.trace_stop"() : () -> ()
    %114 = vector.broadcast %97 : vector<1x32xf32> to vector<16x32xf32>
    %115 = arith.mulf %113, %114 : vector<16x32xf32>
    %116 = arith.addf %90, %115 : vector<16x32xf32>
    %c24_i32_47 = arith.constant 24 : i32
    %117 = vector.broadcast %c24_i32_47 : i32 to vector<1x32xi32>
    %118 = arith.cmpi sge, %37, %117 : vector<1x32xi32>
    %c32_i32 = arith.constant 32 : i32
    %119 = vector.broadcast %c32_i32 : i32 to vector<1x32xi32>
    %120 = arith.cmpi slt, %37, %119 : vector<1x32xi32>
    %121 = arith.andi %118, %120 : vector<1x32xi1>
    %122 = arith.extui %121 : vector<1x32xi1> to vector<1x32xi32>
    %123 = arith.sitofp %122 : vector<1x32xi32> to vector<1x32xf32>
    %124 = vector.broadcast %123 : vector<1x32xf32> to vector<16x32xf32>
    %125 = arith.mulf %19, %124 : vector<16x32xf32>
    %126 = arith.truncf %125 : vector<16x32xf32> to vector<16x32xbf16>
    "tpu.trace_start"() <{level = 10 : i32, message = "qc,kc->qk"}> : () -> ()
    %cst_48 = arith.constant dense<0.000000e+00> : vector<16x16xf32>
    %127 = tpu.matmul %126, %34, %cst_48 {dimension_numbers = #tpu.dot_dimension_numbers<[1], [1], [0], [0], [0, 0, 1, 0], [], []>} : vector<16x32xbf16>, vector<16x32xbf16>, vector<16x16xf32> -> vector<16x16xf32>
    "tpu.trace_stop"() : () -> ()
    %128 = arith.addf %127, %36 : vector<16x16xf32>
    %cst_49 = arith.constant dense<0xFF800000> : vector<16xf32>
    %129 = vector.multi_reduction <maximumf>, %128, %cst_49 [1] : vector<16x16xf32> to vector<16xf32>
    %130 = vector.shape_cast %129 : vector<16xf32> to vector<16x1xf32>
    %131 = vector.broadcast %130 : vector<16x1xf32> to vector<16x16xf32>
    %132 = arith.subf %128, %131 : vector<16x16xf32>
    %133 = math.exp %132 : vector<16x16xf32>
    %cst_50 = arith.constant dense<0.000000e+00> : vector<16xf32>
    %134 = vector.multi_reduction <add>, %133, %cst_50 [1] : vector<16x16xf32> to vector<16xf32>
    %135 = vector.shape_cast %134 : vector<16xf32> to vector<16x1xf32>
    %136 = vector.broadcast %135 : vector<16x1xf32> to vector<16x16xf32>
    %137 = arith.divf %133, %136 : vector<16x16xf32>
    %138 = arith.truncf %137 : vector<16x16xf32> to vector<16x16xbf16>
    "tpu.trace_start"() <{level = 10 : i32, message = "qk,kc->qc"}> : () -> ()
    %cst_51 = arith.constant dense<0.000000e+00> : vector<16x32xf32>
    %139 = tpu.matmul %138, %35, %cst_51 {dimension_numbers = #tpu.dot_dimension_numbers<[1], [0], [0], [1], [0, 0, 1, 1], [], []>} : vector<16x16xbf16>, vector<16x32xbf16>, vector<16x32xf32> -> vector<16x32xf32>
    "tpu.trace_stop"() : () -> ()
    %140 = vector.broadcast %123 : vector<1x32xf32> to vector<16x32xf32>
    %141 = arith.mulf %139, %140 : vector<16x32xf32>
    %142 = arith.addf %116, %141 : vector<16x32xf32>
    %143 = arith.truncf %142 : vector<16x32xf32> to vector<16x32xbf16>
    %c0_52 = arith.constant 0 : index
    %c0_53 = arith.constant 0 : index
    %c0_54 = arith.constant 0 : index
    %144 = vector.load %arg6[%c0_52, %c0_53, %c0_54] : memref<1x32x32xbf16, #tpu.memory_space<vmem>>, vector<1x32x32xbf16>
    %145 = vector.shape_cast %144 : vector<1x32x32xbf16> to vector<32x32xbf16>
    %cst_55 = arith.constant dense<0.000000e+00> : vector<16x32xf32>
    %146 = tpu.matmul %143, %145, %cst_55 {dimension_numbers = #tpu.dot_dimension_numbers<[1], [0], [0], [1], [0, 0, 1, 1], [], []>} : vector<16x32xbf16>, vector<32x32xbf16>, vector<16x32xf32> -> vector<16x32xf32>
    %147 = vector.broadcast %6 : vector<1x32xf32> to vector<16x32xf32>
    %148 = arith.addf %146, %147 : vector<16x32xf32>
    %149 = arith.addf %148, %3 : vector<16x32xf32>
    %cst_56 = arith.constant dense<0.000000e+00> : vector<16xf32>
    %150 = vector.multi_reduction <add>, %149, %cst_56 [1] : vector<16x32xf32> to vector<16xf32>
    %151 = vector.shape_cast %150 : vector<16xf32> to vector<16x1xf32>
    %cst_57 = arith.constant 3.200000e+01 : f32
    %152 = vector.broadcast %cst_57 : f32 to vector<16x1xf32>
    %153 = arith.divf %151, %152 : vector<16x1xf32>
    %154 = vector.broadcast %153 : vector<16x1xf32> to vector<16x32xf32>
    %155 = arith.subf %149, %154 : vector<16x32xf32>
    %156 = arith.mulf %155, %155 : vector<16x32xf32>
    %cst_58 = arith.constant dense<0.000000e+00> : vector<16xf32>
    %157 = vector.multi_reduction <add>, %156, %cst_58 [1] : vector<16x32xf32> to vector<16xf32>
    %158 = vector.shape_cast %157 : vector<16xf32> to vector<16x1xf32>
    %cst_59 = arith.constant 3.200000e+01 : f32
    %159 = vector.broadcast %cst_59 : f32 to vector<16x1xf32>
    %160 = arith.divf %158, %159 : vector<16x1xf32>
    %cst_60 = arith.constant 9.99999996E-13 : f32
    %161 = vector.broadcast %cst_60 : f32 to vector<16x1xf32>
    %162 = arith.addf %160, %161 : vector<16x1xf32>
    %163 = math.rsqrt %162 : vector<16x1xf32>
    %164 = vector.broadcast %163 : vector<16x1xf32> to vector<16x32xf32>
    %165 = arith.mulf %155, %164 : vector<16x32xf32>
    %166 = vector.broadcast %7 : vector<1x32xf32> to vector<16x32xf32>
    %167 = arith.mulf %165, %166 : vector<16x32xf32>
    %168 = vector.broadcast %8 : vector<1x32xf32> to vector<16x32xf32>
    %169 = arith.addf %167, %168 : vector<16x32xf32>
    %170 = arith.truncf %169 : vector<16x32xf32> to vector<16x32xbf16>
    %c0_61 = arith.constant 0 : index
    %c0_62 = arith.constant 0 : index
    %c0_63 = arith.constant 0 : index
    %171 = vector.load %arg7[%c0_61, %c0_62, %c0_63] : memref<1x32x64xbf16, #tpu.memory_space<vmem>>, vector<1x32x64xbf16>
    %172 = vector.shape_cast %171 : vector<1x32x64xbf16> to vector<32x64xbf16>
    %cst_64 = arith.constant dense<0.000000e+00> : vector<16x64xf32>
    %173 = tpu.matmul %170, %172, %cst_64 {dimension_numbers = #tpu.dot_dimension_numbers<[1], [0], [0], [1], [0, 0, 1, 1], [], []>} : vector<16x32xbf16>, vector<32x64xbf16>, vector<16x64xf32> -> vector<16x64xf32>
    %c0_65 = arith.constant 0 : index
    %c0_66 = arith.constant 0 : index
    %c0_67 = arith.constant 0 : index
    %174 = vector.load %arg8[%c0_65, %c0_66, %c0_67] : memref<1x1x64xf32, #tpu.memory_space<vmem>>, vector<1x1x64xf32>
    %175 = vector.shape_cast %174 : vector<1x1x64xf32> to vector<1x64xf32>
    %176 = vector.broadcast %175 : vector<1x64xf32> to vector<16x64xf32>
    %177 = arith.addf %173, %176 : vector<16x64xf32>
    %cst_68 = arith.constant 5.000000e-01 : f32
    %178 = vector.broadcast %cst_68 : f32 to vector<16x64xf32>
    %179 = arith.mulf %178, %177 : vector<16x64xf32>
    %cst_69 = arith.constant 4.471500e-02 : f32
    %180 = vector.broadcast %cst_69 : f32 to vector<16x64xf32>
    %181 = arith.mulf %180, %177 : vector<16x64xf32>
    %182 = arith.mulf %181, %177 : vector<16x64xf32>
    %183 = arith.mulf %182, %177 : vector<16x64xf32>
    %184 = arith.addf %177, %183 : vector<16x64xf32>
    %cst_70 = arith.constant 0.797884583 : f32
    %185 = vector.broadcast %cst_70 : f32 to vector<16x64xf32>
    %186 = arith.mulf %185, %184 : vector<16x64xf32>
    %187 = math.tanh %186 : vector<16x64xf32>
    %cst_71 = arith.constant 1.000000e+00 : f32
    %188 = vector.broadcast %cst_71 : f32 to vector<16x64xf32>
    %189 = arith.addf %188, %187 : vector<16x64xf32>
    %190 = arith.mulf %179, %189 : vector<16x64xf32>
    %191 = arith.truncf %190 : vector<16x64xf32> to vector<16x64xbf16>
    %c0_72 = arith.constant 0 : index
    %c0_73 = arith.constant 0 : index
    %c0_74 = arith.constant 0 : index
    %192 = vector.load %arg9[%c0_72, %c0_73, %c0_74] : memref<1x64x32xbf16, #tpu.memory_space<vmem>>, vector<1x64x32xbf16>
    %193 = vector.shape_cast %192 : vector<1x64x32xbf16> to vector<64x32xbf16>
    %cst_75 = arith.constant dense<0.000000e+00> : vector<16x32xf32>
    %194 = tpu.matmul %191, %193, %cst_75 {dimension_numbers = #tpu.dot_dimension_numbers<[1], [0], [0], [1], [0, 0, 1, 1], [], []>} : vector<16x64xbf16>, vector<64x32xbf16>, vector<16x32xf32> -> vector<16x32xf32>
    %195 = vector.broadcast %9 : vector<1x32xf32> to vector<16x32xf32>
    %196 = arith.addf %194, %195 : vector<16x32xf32>
    %197 = arith.addf %196, %169 : vector<16x32xf32>
    %cst_76 = arith.constant dense<0.000000e+00> : vector<16xf32>
    %198 = vector.multi_reduction <add>, %197, %cst_76 [1] : vector<16x32xf32> to vector<16xf32>
    %199 = vector.shape_cast %198 : vector<16xf32> to vector<16x1xf32>
    %cst_77 = arith.constant 3.200000e+01 : f32
    %200 = vector.broadcast %cst_77 : f32 to vector<16x1xf32>
    %201 = arith.divf %199, %200 : vector<16x1xf32>
    %202 = vector.broadcast %201 : vector<16x1xf32> to vector<16x32xf32>
    %203 = arith.subf %197, %202 : vector<16x32xf32>
    %204 = arith.mulf %203, %203 : vector<16x32xf32>
    %cst_78 = arith.constant dense<0.000000e+00> : vector<16xf32>
    %205 = vector.multi_reduction <add>, %204, %cst_78 [1] : vector<16x32xf32> to vector<16xf32>
    %206 = vector.shape_cast %205 : vector<16xf32> to vector<16x1xf32>
    %cst_79 = arith.constant 3.200000e+01 : f32
    %207 = vector.broadcast %cst_79 : f32 to vector<16x1xf32>
    %208 = arith.divf %206, %207 : vector<16x1xf32>
    %cst_80 = arith.constant 9.99999996E-13 : f32
    %209 = vector.broadcast %cst_80 : f32 to vector<16x1xf32>
    %210 = arith.addf %208, %209 : vector<16x1xf32>
    %211 = math.rsqrt %210 : vector<16x1xf32>
    %212 = vector.broadcast %211 : vector<16x1xf32> to vector<16x32xf32>
    %213 = arith.mulf %203, %212 : vector<16x32xf32>
    %214 = vector.broadcast %10 : vector<1x32xf32> to vector<16x32xf32>
    %215 = arith.mulf %213, %214 : vector<16x32xf32>
    %216 = vector.broadcast %11 : vector<1x32xf32> to vector<16x32xf32>
    %217 = arith.addf %215, %216 : vector<16x32xf32>
    %c0_81 = arith.constant 0 : index
    %c0_82 = arith.constant 0 : index
    %218 = vector.load %arg11[%c0_81, %c0_82] : memref<16x32xf32, #tpu.memory_space<vmem>>, vector<16x32xf32>
    tpu.vector_store %arg11[%c0_81, %c0_82], %217 {strides = array<i32>} : memref<16x32xf32, #tpu.memory_space<vmem>>, vector<16x32xf32>,
    return
  }
  func.func @transform_0(%arg0: i32) -> (i32, i32) {
    %c0_i32 = arith.constant 0 : i32
    %c0_i32_0 = arith.constant 0 : i32
    %c0_i32_1 = arith.constant 0 : i32
    return %c0_i32, %c0_i32_0 : i32, i32
  }
  func.func @transform_1(%arg0: i32) -> (i32, i32) {
    %c0_i32 = arith.constant 0 : i32
    %c0_i32_0 = arith.constant 0 : i32
    %c0_i32_1 = arith.constant 0 : i32
    return %c0_i32, %c0_i32_0 : i32, i32
  }
  func.func @transform_2(%arg0: i32) -> (i32, i32) {
    %c0_i32 = arith.constant 0 : i32
    %c0_i32_0 = arith.constant 0 : i32
    %c0_i32_1 = arith.constant 0 : i32
    return %c0_i32, %c0_i32_0 : i32, i32
  }
  func.func @transform_3(%arg0: i32) -> (i32, i32, i32, i32) {
    %c0_i32 = arith.constant 0 : i32
    %c0_i32_0 = arith.constant 0 : i32
    %c0_i32_1 = arith.constant 0 : i32
    %c0_i32_2 = arith.constant 0 : i32
    return %arg0, %c0_i32, %c0_i32_0, %c0_i32_1 : i32, i32, i32, i32
  }
  func.func @transform_4(%arg0: i32) -> (i32, i32, i32, i32) {
    %c0_i32 = arith.constant 0 : i32
    %c0_i32_0 = arith.constant 0 : i32
    %c0_i32_1 = arith.constant 0 : i32
    %c0_i32_2 = arith.constant 0 : i32
    return %arg0, %c0_i32, %c0_i32_0, %c0_i32_1 : i32, i32, i32, i32
  }
  func.func @transform_5(%arg0: i32) -> (i32, i32, i32) {
    %c0_i32 = arith.constant 0 : i32
    %c0_i32_0 = arith.constant 0 : i32
    %c0_i32_1 = arith.constant 0 : i32
    return %arg0, %c0_i32, %c0_i32_0 : i32, i32, i32
  }
  func.func @transform_6(%arg0: i32) -> (i32, i32, i32) {
    %c0_i32 = arith.constant 0 : i32
    %c0_i32_0 = arith.constant 0 : i32
    %c0_i32_1 = arith.constant 0 : i32
    return %arg0, %c0_i32, %c0_i32_0 : i32, i32, i32
  }
  func.func @transform_7(%arg0: i32) -> (i32, i32, i32) {
    %c0_i32 = arith.constant 0 : i32
    %c0_i32_0 = arith.constant 0 : i32
    %c0_i32_1 = arith.constant 0 : i32
    return %arg0, %c0_i32, %c0_i32_0 : i32, i32, i32
  }
  func.func @transform_8(%arg0: i32) -> (i32, i32, i32) {
    %c0_i32 = arith.constant 0 : i32
    %c0_i32_0 = arith.constant 0 : i32
    %c0_i32_1 = arith.constant 0 : i32
    return %arg0, %c0_i32, %c0_i32_0 : i32, i32, i32
  }
  func.func @transform_9(%arg0: i32) -> (i32, i32, i32) {
    %c0_i32 = arith.constant 0 : i32
    %c0_i32_0 = arith.constant 0 : i32
    %c0_i32_1 = arith.constant 0 : i32
    return %arg0, %c0_i32, %c0_i32_0 : i32, i32, i32
  }
  func.func @transform_10(%arg0: i32) -> (i32, i32) {
    %c0_i32 = arith.constant 0 : i32
    %c0_i32_0 = arith.constant 0 : i32
    %c0_i32_1 = arith.constant 0 : i32
    return %c0_i32, %c0_i32_0 : i32, i32
  }
}

</mosaic_0001>

<llo_original>
// kernel: _lambda_.3
$region0: #{_lambda_.3}
  #allocation0 [shape = 'u32[]', space=smem, size = 0x4, offset = 0x4, fixed_abs, tag = 'smem constant byte address 0x4 - core index']
  #allocation1 [shape = 'u32[72,128]{1,0:T(1,128)}', space=vmem, size = 0x9000, scoped, tag = 'internal scratch']
  %s0 = inlined_call_operand.vmem [shape: f32[16,32], index: 0, kind: input, shape index: {}]
  %s1 = inlined_call_operand.vmem [shape: bf16[32,128], index: 1, kind: input, shape index: {}]
  %s2 = inlined_call_operand.vmem [shape: f32[1,128], index: 2, kind: input, shape index: {}]
  %s3 = inlined_call_operand.vmem [shape: f32[16,128], index: 3, kind: output, shape index: {}]
  %s4 = sld [smem:[#allocation0]]
  $region22: #{_lambda_.3} parent=0
    _
  %s6 = ssub.s32 1, %s4
  %s7 = scalar_select 0, %s6, %s4
  // Predicated region
  $region2: #{_lambda_.3} parent=0 // pred_check
    _
  $region3: #{_lambda_.3} parent=0 // pred_check_branch
    %9 = sbr.rel (0) target = $region5
  $region4: #{_lambda_.3} parent=0 // pred_region
    _
  $region5: #{_lambda_.3} parent=0 // pred_fallthru
    _
  // Predicated region
  $region6: #{_lambda_.3} parent=0 // pred_check
    _
  $region7: #{_lambda_.3} parent=0 // pred_check_branch
    %11 = sbr.rel (0) target = $region9
  $region8: #{_lambda_.3} parent=0 // pred_region
    _
  $region9: #{_lambda_.3} parent=0 // pred_fallthru
    _
  // Predicated region
  $region10: #{_lambda_.3} parent=0 // pred_check
    _
  $region11: #{_lambda_.3} parent=0 // pred_check_branch
    %13 = sbr.rel (0) target = $region13
  $region12: #{_lambda_.3} parent=0 // pred_region
    _
  $region13: #{_lambda_.3} parent=0 // pred_fallthru
    _
  %v15 = vld [vmem:[%s0] sm:$0xff]
  %v16 = vld [vmem:[%s0 + $0x8] sm:$0xff]
  %v17 = vpack.c.bf16 %v16, %v15
  %v18 = vld [vmem:[%s1] sm:$0xf]
  %v19 = vld [vmem:[%s1 + $0x4] sm:$0xf]
  %v20 = vld [vmem:[%s1 + $0x8] sm:$0xf]
  %v21 = vld [vmem:[%s1 + $0xc] sm:$0xf]
  %v22 = vld [vmem:[%s2] sm:$0x1]
  %v24 = vperm.slane %v22, 0
  %v30 = vunpack.c.l.b16 %v18
  %v31 = vunpack.c.l.b16 %v19
  %v32 = vunpack.c.l.b16 %v20
  %v33 = vunpack.c.l.b16 %v21
  %v34 = vpack.c.b16 %v31, %v30
  %v35 = vpack.c.b16 %v33, %v32
  %vm38 = vcmask 261120
  %v40 = vsel %vm38, %v17, 0
  %42 = vmatpush.bf16.msra.mxu0 0
  %43 = vmatpush.bf16.msra.mxu0 0
  %44 = vmatpush.bf16.msra.mxu0 0
  %45 = vmatpush.bf16.msra.mxu0 0
  %46 = vmatpush.bf16.msra.mxu0 0
  %47 = vmatpush.bf16.msra.mxu0 0
  %48 = vmatpush.bf16.msra.mxu0 %v35
  %49 = vmatpush.bf16.msra.mxu0 %v34
  %50 = vmatmul.bf16.gmra.mxu0 %v40
  %v51 = vpop.f32.mrf.mxu0
  %v52 = vadd.f32 %v24, %v51
  %v53 = vpop.f32.mrf.mxu0
  %v54 = vadd.f32 %v24, %v53
  %55 = vdwg.mxu0
  %56 = vst [vmem:[%s3] sm:$0xff] %v52
  %57 = vst [vmem:[%s3 + $0x8] sm:$0xff] %v54
  // Predicated region
  $region14: #{_lambda_.3} parent=0 // pred_check
    _
  $region15: #{_lambda_.3} parent=0 // pred_check_branch
    %59 = sbr.rel (0) target = $region17
  $region16: #{_lambda_.3} parent=0 // pred_region
    _
  $region17: #{_lambda_.3} parent=0 // pred_fallthru
    _
  // Predicated region
  $region18: #{_lambda_.3} parent=0 // pred_check
    _
  $region19: #{_lambda_.3} parent=0 // pred_check_branch
    %61 = sbr.rel (0) target = $region21
  $region20: #{_lambda_.3} parent=0 // pred_region
    _
  $region21: #{_lambda_.3} parent=0 // pred_fallthru
    _

// kernel: _lambda_.2
$region0: #{_lambda_.2}
  #allocation0 [shape = 'u32[]', space=smem, size = 0x4, offset = 0x4, fixed_abs, tag = 'smem constant byte address 0x4 - core index']
  #allocation1 [shape = 'u32[72,128]{1,0:T(1,128)}', space=vmem, size = 0x9000, scoped, tag = 'internal scratch']
  %s0 = inlined_call_operand.vmem [shape: f32[16,32], index: 0, kind: input, shape index: {}]
  %s1 = inlined_call_operand.vmem [shape: f32[16,16], index: 1, kind: input, shape index: {}]
  %s2 = inlined_call_operand.vmem [shape: f32[2,32], index: 2, kind: input, shape index: {}]
  %s3 = inlined_call_operand.vmem [shape: bf16[2,3,32,32], index: 3, kind: input, shape index: {}]
  %s4 = inlined_call_operand.vmem [shape: f32[2,3,1,32], index: 4, kind: input, shape index: {}]
  %s5 = inlined_call_operand.vmem [shape: bf16[2,32,32], index: 5, kind: input, shape index: {}]
  %s6 = inlined_call_operand.vmem [shape: bf16[2,32,64], index: 6, kind: input, shape index: {}]
  %s7 = inlined_call_operand.vmem [shape: f32[2,1,64], index: 7, kind: input, shape index: {}]
  %s8 = inlined_call_operand.vmem [shape: bf16[2,64,32], index: 8, kind: input, shape index: {}]
  %s9 = inlined_call_operand.vmem [shape: f32[2,6,32], index: 9, kind: input, shape index: {}]
  %s10 = inlined_call_operand.vmem [shape: f32[16,32], index: 10, kind: output, shape index: {}]
  %s11 = sld [smem:[#allocation0]]
  $region77: #{_lambda_.2} parent=0
    _
  %s13 = ssub.s32 1, %s11
  %s14 = scalar_select 0, %s13, %s11
  loop: start=0, step=1, limit=4
  $region2: #{_lambda_.2} parent=0 // loop_pre_header
    _
  $region3: #{_lambda_.2} parent=0 // loop_header
    %s16 = sphi 0, %s20
    %p17 = scmp.ge.s32.totalorder %s16, 4
    %s24 = sphi 0, %s24
    %s26 = sphi 0, %s24
    %s27 = sphi 0, %s26
    %s41 = sphi 0, %s27
    %s45 = sphi 0, %s45
    %s47 = sphi 0, %s45
    %s48 = sphi 0, %s47
    %s62 = sphi 0, %s48
    %s66 = sphi 0, %s66
    %s68 = sphi 0, %s66
    %s69 = sphi 0, %s68
    %s83 = sphi 0, %s69
    %s89 = sphi 0, %s91
    %s92 = sphi 0, %s89
    %s93 = sphi 0, %s92
    %s109 = sphi 0, %s93
    %s115 = sphi 0, %s117
    %s118 = sphi 0, %s115
    %s119 = sphi 0, %s118
    %s135 = sphi 0, %s119
    %s141 = sphi 0, %s143
    %s144 = sphi 0, %s141
    %s145 = sphi 0, %s144
    %s161 = sphi 0, %s145
    %s167 = sphi 0, %s169
    %s170 = sphi 0, %s167
    %s171 = sphi 0, %s170
    %s187 = sphi 0, %s171
    %s193 = sphi 0, %s195
    %s196 = sphi 0, %s193
    %s197 = sphi 0, %s196
    %s213 = sphi 0, %s197
    %s219 = sphi 0, %s221
    %s222 = sphi 0, %s219
    %s223 = sphi 0, %s222
    %s239 = sphi 0, %s223
    %s245 = sphi 0, %s247
    %s248 = sphi 0, %s245
    %s249 = sphi 0, %s248
    %s265 = sphi 0, %s249
    %s269 = sphi 0, %s269
    %s271 = sphi 0, %s269
    %s272 = sphi 0, %s271
    %s286 = sphi 0, %s272
  $region4: #{_lambda_.2} parent=0 // loop_header_branch
    %19 = sbr.rel (%p17) target = $region8
  $region5: #{_lambda_.2} parent=0 // loop_body
    %s21 = ssub.s32 %s16, 1
    %s22 = ssub.s32 %s16, 2
    %s23 = sadd.s32 %s16, 1
    %s25 = sadd.s32 %s24, 1
    %p28 = scmp.eq.s32.totalorder %s16, 1
    %p29 = scmp.ne.s32.totalorder %s24, %s26
    %p30 = scmp.eq.s32.totalorder %s16, 0
    %p31 = por %p29, %p30
    %p32 = scmp.ne.s32.totalorder %s24, %s26
    %p33 = scmp.eq.s32.totalorder %s21, 1
    %p34 = por %p32, %p33
    %p35 = scmp.ne.s32.totalorder %s26, %s27
    %p36 = scmp.eq.s32.totalorder %s21, 0
    %p37 = por %p35, %p36
    %p38 = scmp.ne.s32.totalorder %s26, %s27
    %p39 = scmp.eq.s32.totalorder %s22, 1
    %p40 = por %p38, %p39
    %p42 = scmp.ne.s32.totalorder %s27, %s41
    %p43 = scmp.eq.s32.totalorder %s22, 0
    %p44 = por %p42, %p43
    %s46 = sadd.s32 %s45, 1
    %p49 = scmp.eq.s32.totalorder %s16, 1
    %p50 = scmp.ne.s32.totalorder %s45, %s47
    %p51 = scmp.eq.s32.totalorder %s16, 0
    %p52 = por %p50, %p51
    %p53 = scmp.ne.s32.totalorder %s45, %s47
    %p54 = scmp.eq.s32.totalorder %s21, 1
    %p55 = por %p53, %p54
    %p56 = scmp.ne.s32.totalorder %s47, %s48
    %p57 = scmp.eq.s32.totalorder %s21, 0
    %p58 = por %p56, %p57
    %p59 = scmp.ne.s32.totalorder %s47, %s48
    %p60 = scmp.eq.s32.totalorder %s22, 1
    %p61 = por %p59, %p60
    %p63 = scmp.ne.s32.totalorder %s48, %s62
    %p64 = scmp.eq.s32.totalorder %s22, 0
    %p65 = por %p63, %p64
    %s67 = sadd.s32 %s66, 1
    %p70 = scmp.eq.s32.totalorder %s16, 1
    %p71 = scmp.ne.s32.totalorder %s66, %s68
    %p72 = scmp.eq.s32.totalorder %s16, 0
    %p73 = por %p71, %p72
    %p74 = scmp.ne.s32.totalorder %s66, %s68
    %p75 = scmp.eq.s32.totalorder %s21, 1
    %p76 = por %p74, %p75
    %p77 = scmp.ne.s32.totalorder %s68, %s69
    %p78 = scmp.eq.s32.totalorder %s21, 0
    %p79 = por %p77, %p78
    %p80 = scmp.ne.s32.totalorder %s68, %s69
    %p81 = scmp.eq.s32.totalorder %s22, 1
    %p82 = por %p80, %p81
    %p84 = scmp.ne.s32.totalorder %s69, %s83
    %p85 = scmp.eq.s32.totalorder %s22, 0
    %p86 = por %p84, %p85
    %s87 = ssub.s32 %s16, %s23
    %p88 = scmp.eq.s32.totalorder %s87, 0
    %s90 = sadd.s32 %s89, 1
    %s91 = scalar_select %p88, %s89, %s90
    %p94 = pneg %p88
    %p95 = scmp.eq.s32.totalorder %s16, 1
    %p96 = por %p94, %p95
    %p97 = scmp.ne.s32.totalorder %s89, %s92
    %p98 = scmp.eq.s32.totalorder %s16, 0
    %p99 = por %p97, %p98
    %p100 = scmp.ne.s32.totalorder %s89, %s92
    %p101 = scmp.eq.s32.totalorder %s21, 1
    %p102 = por %p100, %p101
    %p103 = scmp.ne.s32.totalorder %s92, %s93
    %p104 = scmp.eq.s32.totalorder %s21, 0
    %p105 = por %p103, %p104
    %p106 = scmp.ne.s32.totalorder %s92, %s93
    %p107 = scmp.eq.s32.totalorder %s22, 1
    %p108 = por %p106, %p107
    %p110 = scmp.ne.s32.totalorder %s93, %s109
    %p111 = scmp.eq.s32.totalorder %s22, 0
    %p112 = por %p110, %p111
    %s113 = ssub.s32 %s16, %s23
    %p114 = scmp.eq.s32.totalorder %s113, 0
    %s116 = sadd.s32 %s115, 1
    %s117 = scalar_select %p114, %s115, %s116
    %p120 = pneg %p114
    %p121 = scmp.eq.s32.totalorder %s16, 1
    %p122 = por %p120, %p121
    %p123 = scmp.ne.s32.totalorder %s115, %s118
    %p124 = scmp.eq.s32.totalorder %s16, 0
    %p125 = por %p123, %p124
    %p126 = scmp.ne.s32.totalorder %s115, %s118
    %p127 = scmp.eq.s32.totalorder %s21, 1
    %p128 = por %p126, %p127
    %p129 = scmp.ne.s32.totalorder %s118, %s119
    %p130 = scmp.eq.s32.totalorder %s21, 0
    %p131 = por %p129, %p130
    %p132 = scmp.ne.s32.totalorder %s118, %s119
    %p133 = scmp.eq.s32.totalorder %s22, 1
    %p134 = por %p132, %p133
    %p136 = scmp.ne.s32.totalorder %s119, %s135
    %p137 = scmp.eq.s32.totalorder %s22, 0
    %p138 = por %p136, %p137
    %s139 = ssub.s32 %s16, %s23
    %p140 = scmp.eq.s32.totalorder %s139, 0
    %s142 = sadd.s32 %s141, 1
    %s143 = scalar_select %p140, %s141, %s142
    %p146 = pneg %p140
    %p147 = scmp.eq.s32.totalorder %s16, 1
    %p148 = por %p146, %p147
    %p149 = scmp.ne.s32.totalorder %s141, %s144
    %p150 = scmp.eq.s32.totalorder %s16, 0
    %p151 = por %p149, %p150
    %p152 = scmp.ne.s32.totalorder %s141, %s144
    %p153 = scmp.eq.s32.totalorder %s21, 1
    %p154 = por %p152, %p153
    %p155 = scmp.ne.s32.totalorder %s144, %s145
    %p156 = scmp.eq.s32.totalorder %s21, 0
    %p157 = por %p155, %p156
    %p158 = scmp.ne.s32.totalorder %s144, %s145
    %p159 = scmp.eq.s32.totalorder %s22, 1
    %p160 = por %p158, %p159
    %p162 = scmp.ne.s32.totalorder %s145, %s161
    %p163 = scmp.eq.s32.totalorder %s22, 0
    %p164 = por %p162, %p163
    %s165 = ssub.s32 %s16, %s23
    %p166 = scmp.eq.s32.totalorder %s165, 0
    %s168 = sadd.s32 %s167, 1
    %s169 = scalar_select %p166, %s167, %s168
    %p172 = pneg %p166
    %p173 = scmp.eq.s32.totalorder %s16, 1
    %p174 = por %p172, %p173
    %p175 = scmp.ne.s32.totalorder %s167, %s170
    %p176 = scmp.eq.s32.totalorder %s16, 0
    %p177 = por %p175, %p176
    %p178 = scmp.ne.s32.totalorder %s167, %s170
    %p179 = scmp.eq.s32.totalorder %s21, 1
    %p180 = por %p178, %p179
    %p181 = scmp.ne.s32.totalorder %s170, %s171
    %p182 = scmp.eq.s32.totalorder %s21, 0
    %p183 = por %p181, %p182
    %p184 = scmp.ne.s32.totalorder %s170, %s171
    %p185 = scmp.eq.s32.totalorder %s22, 1
    %p186 = por %p184, %p185
    %p188 = scmp.ne.s32.totalorder %s171, %s187
    %p189 = scmp.eq.s32.totalorder %s22, 0
    %p190 = por %p188, %p189
    %s191 = ssub.s32 %s16, %s23
    %p192 = scmp.eq.s32.totalorder %s191, 0
    %s194 = sadd.s32 %s193, 1
    %s195 = scalar_select %p192, %s193, %s194
    %p198 = pneg %p192
    %p199 = scmp.eq.s32.totalorder %s16, 1
    %p200 = por %p198, %p199
    %p201 = scmp.ne.s32.totalorder %s193, %s196
    %p202 = scmp.eq.s32.totalorder %s16, 0
    %p203 = por %p201, %p202
    %p204 = scmp.ne.s32.totalorder %s193, %s196
    %p205 = scmp.eq.s32.totalorder %s21, 1
    %p206 = por %p204, %p205
    %p207 = scmp.ne.s32.totalorder %s196, %s197
    %p208 = scmp.eq.s32.totalorder %s21, 0
    %p209 = por %p207, %p208
    %p210 = scmp.ne.s32.totalorder %s196, %s197
    %p211 = scmp.eq.s32.totalorder %s22, 1
    %p212 = por %p210, %p211
    %p214 = scmp.ne.s32.totalorder %s197, %s213
    %p215 = scmp.eq.s32.totalorder %s22, 0
    %p216 = por %p214, %p215
    %s217 = ssub.s32 %s16, %s23
    %p218 = scmp.eq.s32.totalorder %s217, 0
    %s220 = sadd.s32 %s219, 1
    %s221 = scalar_select %p218, %s219, %s220
    %p224 = pneg %p218
    %p225 = scmp.eq.s32.totalorder %s16, 1
    %p226 = por %p224, %p225
    %p227 = scmp.ne.s32.totalorder %s219, %s222
    %p228 = scmp.eq.s32.totalorder %s16, 0
    %p229 = por %p227, %p228
    %p230 = scmp.ne.s32.totalorder %s219, %s222
    %p231 = scmp.eq.s32.totalorder %s21, 1
    %p232 = por %p230, %p231
    %p233 = scmp.ne.s32.totalorder %s222, %s223
    %p234 = scmp.eq.s32.totalorder %s21, 0
    %p235 = por %p233, %p234
    %p236 = scmp.ne.s32.totalorder %s222, %s223
    %p237 = scmp.eq.s32.totalorder %s22, 1
    %p238 = por %p236, %p237
    %p240 = scmp.ne.s32.totalorder %s223, %s239
    %p241 = scmp.eq.s32.totalorder %s22, 0
    %p242 = por %p240, %p241
    %s243 = ssub.s32 %s16, %s23
    %p244 = scmp.eq.s32.totalorder %s243, 0
    %s246 = sadd.s32 %s245, 1
    %s247 = scalar_select %p244, %s245, %s246
    %p250 = pneg %p244
    %p251 = scmp.eq.s32.totalorder %s16, 1
    %p252 = por %p250, %p251
    %p253 = scmp.ne.s32.totalorder %s245, %s248
    %p254 = scmp.eq.s32.totalorder %s16, 0
    %p255 = por %p253, %p254
    %p256 = scmp.ne.s32.totalorder %s245, %s248
    %p257 = scmp.eq.s32.totalorder %s21, 1
    %p258 = por %p256, %p257
    %p259 = scmp.ne.s32.totalorder %s248, %s249
    %p260 = scmp.eq.s32.totalorder %s21, 0
    %p261 = por %p259, %p260
    %p262 = scmp.ne.s32.totalorder %s248, %s249
    %p263 = scmp.eq.s32.totalorder %s22, 1
    %p264 = por %p262, %p263
    %p266 = scmp.ne.s32.totalorder %s249, %s265
    %p267 = scmp.eq.s32.totalorder %s22, 0
    %p268 = por %p266, %p267
    %s270 = sadd.s32 %s269, 1
    %p273 = scmp.eq.s32.totalorder %s16, 1
    %p274 = scmp.ne.s32.totalorder %s269, %s271
    %p275 = scmp.eq.s32.totalorder %s16, 0
    %p276 = por %p274, %p275
    %p277 = scmp.ne.s32.totalorder %s269, %s271
    %p278 = scmp.eq.s32.totalorder %s21, 1
    %p279 = por %p277, %p278
    %p280 = scmp.ne.s32.totalorder %s271, %s272
    %p281 = scmp.eq.s32.totalorder %s21, 0
    %p282 = por %p280, %p281
    %p283 = scmp.ne.s32.totalorder %s271, %s272
    %p284 = scmp.eq.s32.totalorder %s22, 1
    %p285 = por %p283, %p284
    %p287 = scmp.ne.s32.totalorder %s272, %s286
    %p288 = scmp.eq.s32.totalorder %s22, 0
    %p289 = por %p287, %p288
    %p290 = scmp.le.s32.totalorder 1, %s16
    %p291 = scmp.lt.s32.totalorder %s16, 3
    %p292 = pnand %p290, %p291
    %p293 = pneg %p292
    // Predicated region
    $region9: #{_lambda_.2} parent=5 // pred_check
      _
    $region10: #{_lambda_.2} parent=5 // pred_check_branch
      %295 = sbr.rel (%p292) target = $region12
    $region11: #{_lambda_.2} parent=5 // pred_region
      %s296 = ssub.s32 %s16, 1
      // Predicated region
      $region13: #{_lambda_.2} parent=11 // pred_check
        %p297 = pneg %p37
      $region14: #{_lambda_.2} parent=11 // pred_check_branch
        %299 = sbr.rel (%p297) target = $region16
      $region15: #{_lambda_.2} parent=11 // pred_region
        _
      $region16: #{_lambda_.2} parent=11 // pred_fallthru
        _
      // Predicated region
      $region17: #{_lambda_.2} parent=11 // pred_check
        %p300 = pneg %p58
      $region18: #{_lambda_.2} parent=11 // pred_check_branch
        %302 = sbr.rel (%p300) target = $region20
      $region19: #{_lambda_.2} parent=11 // pred_region
        _
      $region20: #{_lambda_.2} parent=11 // pred_fallthru
        _
      // Predicated region
      $region21: #{_lambda_.2} parent=11 // pred_check
        %p303 = pneg %p79
      $region22: #{_lambda_.2} parent=11 // pred_check_branch
        %305 = sbr.rel (%p303) target = $region24
      $region23: #{_lambda_.2} parent=11 // pred_region
        _
      $region24: #{_lambda_.2} parent=11 // pred_fallthru
        _
    $region12: #{_lambda_.2} parent=5 // pred_fallthru
      _
    %p306 = scmp.lt.s32.totalorder %s16, 2
    // Predicated region
    $region25: #{_lambda_.2} parent=5 // pred_check
      %p307 = pneg %p306
    $region26: #{_lambda_.2} parent=5 // pred_check_branch
      %309 = sbr.rel (%p307) target = $region28
    $region27: #{_lambda_.2} parent=5 // pred_region
      // Predicated region
      $region29: #{_lambda_.2} parent=27 // pred_check
        %p310 = pneg %p99
      $region30: #{_lambda_.2} parent=27 // pred_check_branch
        %312 = sbr.rel (%p310) target = $region32
      $region31: #{_lambda_.2} parent=27 // pred_region
        %p313 = scmp.lt.s32.totalorder %s16, 1
        %s314 = scalar_select %p313, %s16, 1
        %s315 = smul.addr %s314, 12
        %s316 = smul.addr %s315, 4
        %s317 = scalar_lea.vmem %s3, %s316
      $region32: #{_lambda_.2} parent=27 // pred_fallthru
        _
      // Predicated region
      $region33: #{_lambda_.2} parent=27 // pred_check
        %p318 = pneg %p125
      $region34: #{_lambda_.2} parent=27 // pred_check_branch
        %320 = sbr.rel (%p318) target = $region36
      $region35: #{_lambda_.2} parent=27 // pred_region
        %p321 = scmp.lt.s32.totalorder %s16, 1
        %s322 = scalar_select %p321, %s16, 1
        %s323 = smul.addr %s322, 3
        %s324 = scalar_lea.vmem %s4, %s323
      $region36: #{_lambda_.2} parent=27 // pred_fallthru
        _
      // Predicated region
      $region37: #{_lambda_.2} parent=27 // pred_check
        %p325 = pneg %p151
      $region38: #{_lambda_.2} parent=27 // pred_check_branch
        %327 = sbr.rel (%p325) target = $region40
      $region39: #{_lambda_.2} parent=27 // pred_region
        %p328 = scmp.lt.s32.totalorder %s16, 1
        %s329 = scalar_select %p328, %s16, 1
        %s330 = smul.addr %s329, 4
        %s331 = smul.addr %s330, 4
        %s332 = scalar_lea.vmem %s5, %s331
      $region40: #{_lambda_.2} parent=27 // pred_fallthru
        _
      // Predicated region
      $region41: #{_lambda_.2} parent=27 // pred_check
        %p333 = pneg %p177
      $region42: #{_lambda_.2} parent=27 // pred_check_branch
        %335 = sbr.rel (%p333) target = $region44
      $region43: #{_lambda_.2} parent=27 // pred_region
        %p336 = scmp.lt.s32.totalorder %s16, 1
        %s337 = scalar_select %p336, %s16, 1
        %s338 = smul.addr %s337, 4
        %s339 = smul.addr %s338, 4
        %s340 = scalar_lea.vmem %s6, %s339
      $region44: #{_lambda_.2} parent=27 // pred_fallthru
        _
      // Predicated region
      $region45: #{_lambda_.2} parent=27 // pred_check
        %p341 = pneg %p203
      $region46: #{_lambda_.2} parent=27 // pred_check_branch
        %343 = sbr.rel (%p341) target = $region48
      $region47: #{_lambda_.2} parent=27 // pred_region
        %p344 = scmp.lt.s32.totalorder %s16, 1
        %s345 = scalar_select %p344, %s16, 1
        %s346 = scalar_lea.vmem %s7, %s345
      $region48: #{_lambda_.2} parent=27 // pred_fallthru
        _
      // Predicated region
      $region49: #{_lambda_.2} parent=27 // pred_check
        %p347 = pneg %p229
      $region50: #{_lambda_.2} parent=27 // pred_check_branch
        %349 = sbr.rel (%p347) target = $region52
      $region51: #{_lambda_.2} parent=27 // pred_region
        %p350 = scmp.lt.s32.totalorder %s16, 1
        %s351 = scalar_select %p350, %s16, 1
        %s352 = smul.addr %s351, 8
        %s353 = smul.addr %s352, 4
        %s354 = scalar_lea.vmem %s8, %s353
      $region52: #{_lambda_.2} parent=27 // pred_fallthru
        _
      // Predicated region
      $region53: #{_lambda_.2} parent=27 // pred_check
        %p355 = pneg %p255
      $region54: #{_lambda_.2} parent=27 // pred_check_branch
        %357 = sbr.rel (%p355) target = $region56
      $region55: #{_lambda_.2} parent=27 // pred_region
        %p358 = scmp.lt.s32.totalorder %s16, 1
        %s359 = scalar_select %p358, %s16, 1
        %s360 = smul.addr %s359, 8
        %s361 = scalar_lea.vmem %s9, %s360
      $region56: #{_lambda_.2} parent=27 // pred_fallthru
        _
    $region28: #{_lambda_.2} parent=5 // pred_fallthru
      _
    %p362 = scmp.le.s32.totalorder 1, %s16
    %p363 = scmp.lt.s32.totalorder %s16, 3
    %p364 = pnand %p362, %p363
    %p365 = pneg %p364
    // Predicated region
    $region57: #{_lambda_.2} parent=5 // pred_check
      _
    $region58: #{_lambda_.2} parent=5 // pred_check_branch
      %367 = sbr.rel (%p364) target = $region60
    $region59: #{_lambda_.2} parent=5 // pred_region
      %s368 = ssub.s32 %s16, 1
      %p369 = pneg %p37
      %p370 = pneg %p34
      %p371 = pneg %p58
      %p372 = pneg %p55
      %p373 = pneg %p79
      %p374 = pneg %p76
      %p375 = scmp.lt.s32.totalorder %s21, 1
      %s376 = scalar_select %p375, %s21, 1
      %s377 = smul.addr %s376, 12
      %s378 = smul.addr %s377, 4
      %s379 = scalar_lea.vmem %s3, %s378
      %p380 = pneg %p105
      %p381 = pneg %p102
      %p382 = scmp.lt.s32.totalorder %s21, 1
      %s383 = scalar_select %p382, %s21, 1
      %s384 = smul.addr %s383, 3
      %s385 = scalar_lea.vmem %s4, %s384
      %p386 = pneg %p131
      %p387 = pneg %p128
      %p388 = scmp.lt.s32.totalorder %s21, 1
      %s389 = scalar_select %p388, %s21, 1
      %s390 = smul.addr %s389, 4
      %s391 = smul.addr %s390, 4
      %s392 = scalar_lea.vmem %s5, %s391
      %p393 = pneg %p157
      %p394 = pneg %p154
      %p395 = scmp.lt.s32.totalorder %s21, 1
      %s396 = scalar_select %p395, %s21, 1
      %s397 = smul.addr %s396, 4
      %s398 = smul.addr %s397, 4
      %s399 = scalar_lea.vmem %s6, %s398
      %p400 = pneg %p183
      %p401 = pneg %p180
      %p402 = scmp.lt.s32.totalorder %s21, 1
      %s403 = scalar_select %p402, %s21, 1
      %s404 = scalar_lea.vmem %s7, %s403
      %p405 = pneg %p209
      %p406 = pneg %p206
      %p407 = scmp.lt.s32.totalorder %s21, 1
      %s408 = scalar_select %p407, %s21, 1
      %s409 = smul.addr %s408, 8
      %s410 = smul.addr %s409, 4
      %s411 = scalar_lea.vmem %s8, %s410
      %p412 = pneg %p235
      %p413 = pneg %p232
      %p414 = scmp.lt.s32.totalorder %s21, 1
      %s415 = scalar_select %p414, %s21, 1
      %s416 = smul.addr %s415, 8
      %s417 = scalar_lea.vmem %s9, %s416
      %p418 = pneg %p261
      %p419 = pneg %p258
      %p420 = pneg %p282
      %p421 = pneg %p279
      %p422 = scmp.lt.s32.totalorder %s21, 1
      %s423 = scalar_select %p422, %s21, 1
      %s424 = smul.addr %s423, 12
      %s425 = smul.addr %s424, 4
      %s426 = scalar_lea.vmem %s3, %s425
      %p427 = scmp.lt.s32.totalorder %s21, 1
      %s428 = scalar_select %p427, %s21, 1
      %s429 = smul.addr %s428, 3
      %s430 = scalar_lea.vmem %s4, %s429
      %p431 = scmp.lt.s32.totalorder %s21, 1
      %s432 = scalar_select %p431, %s21, 1
      %s433 = smul.addr %s432, 4
      %s434 = smul.addr %s433, 4
      %s435 = scalar_lea.vmem %s5, %s434
      %p436 = scmp.lt.s32.totalorder %s21, 1
      %s437 = scalar_select %p436, %s21, 1
      %s438 = smul.addr %s437, 4
      %s439 = smul.addr %s438, 4
      %s440 = scalar_lea.vmem %s6, %s439
      %p441 = scmp.lt.s32.totalorder %s21, 1
      %s442 = scalar_select %p441, %s21, 1
      %s443 = scalar_lea.vmem %s7, %s442
      %p444 = scmp.lt.s32.totalorder %s21, 1
      %s445 = scalar_select %p444, %s21, 1
      %s446 = smul.addr %s445, 8
      %s447 = smul.addr %s446, 4
      %s448 = scalar_lea.vmem %s8, %s447
      %p449 = scmp.lt.s32.totalorder %s21, 1
      %s450 = scalar_select %p449, %s21, 1
      %s451 = smul.addr %s450, 8
      %s452 = scalar_lea.vmem %s9, %s451
      %p454 = scmp.eq.s32.totalorder %s21, 0
      // Predicated region
      $region61: #{_lambda_.2} parent=59 // pred_check
        %p455 = pneg %p454
      $region62: #{_lambda_.2} parent=59 // pred_check_branch
        %457 = sbr.rel (%p455) target = $region64
      $region63: #{_lambda_.2} parent=59 // pred_region
        %v458 = vld [vmem:[%s2] sm:$0x3]
        %v459 = vld [vmem:[%s0] sm:$0xff]
        %v460 = vld [vmem:[%s0 + $0x8] sm:$0xff]
        %vm461 = vcmask 261120
        %v462 = vsel %vm461, %v459, 0.0
        %463 = vadd.xlane.f32.xlu0 %v462
        %v464 = vpop.xlane.xlu0 %463
        %v465 = vsel %vm461, %v460, 0.0
        %466 = vadd.xlane.f32.xlu0 %v465
        %v467 = vpop.xlane.xlu0 %466
        %v468 = vrcp.pop 32.0
        %v469 = vmul.f32 32.0, %v468
        %v470 = vsub.f32 1.0, %v469
        %v471 = vmul.f32 %v468, %v470
        %v472 = vadd.f32 %v468, %v471
        %vm473 = vweird.f32 %v468
        %v474 = vsel %vm473, %v468, %v472
        %v475 = vmul.f32 %v464, %v474
        %v476 = vmul.f32 %v467, %v474
        %v477 = vsub.f32 %v459, %v475
        %v478 = vsub.f32 %v460, %v476
        %v479 = vmul.f32 %v477, %v477
        %v480 = vmul.f32 %v478, %v478
        %v481 = vsel %vm461, %v479, 0.0
        %482 = vadd.xlane.f32.xlu0 %v481
        %v483 = vpop.xlane.xlu0 %482
        %v484 = vsel %vm461, %v480, 0.0
        %485 = vadd.xlane.f32.xlu0 %v484
        %v486 = vpop.xlane.xlu0 %485
        %v487 = vmul.f32 %v483, %v474
        %v488 = vmul.f32 %v486, %v474
        %v489 = vadd.f32 %v487, 1e-12
        %v490 = vadd.f32 %v488, 1e-12
        %v491 = vrsqrt.pop %v489
        %v492 = vmul.f32 %v491, %v489
        %v493 = vmul.f32 %v492, %v491
        %v494 = vmul.f32 0.5, %v493
        %v495 = vsub.f32 1.5, %v494
        %v496 = vmul.f32 %v491, %v495
        %vm497 = vweird.f32 %v489
        %vm498 = vweird.f32 %v491
        %vm499 = vmor %vm497, %vm498
        %v500 = vsel %vm499, %v491, %v496
        %v501 = vrsqrt.pop %v490
        %v502 = vmul.f32 %v501, %v490
        %v503 = vmul.f32 %v502, %v501
        %v504 = vmul.f32 0.5, %v503
        %v505 = vsub.f32 1.5, %v504
        %v506 = vmul.f32 %v501, %v505
        %vm507 = vweird.f32 %v490
        %vm508 = vweird.f32 %v501
        %vm509 = vmor %vm507, %vm508
        %v510 = vsel %vm509, %v501, %v506
        %v511 = vmul.f32 %v477, %v500
        %v512 = vmul.f32 %v478, %v510
        %v513 = vperm.slane %v458, 0
        %v514 = vmul.f32 %v511, %v513
        %v515 = vmul.f32 %v512, %v513
        %v516 = vperm.slane %v458, 1
        %v517 = vadd.f32 %v514, %v516
        %v518 = vadd.f32 %v515, %v516
        %519 = vst.msk [vmem:[%s10] sm:$0xff] %vm461, %v517
        %520 = vst.msk [vmem:[%s10 + $0x8] sm:$0xff] %vm461, %v518
      $region64: #{_lambda_.2} parent=59 // pred_fallthru
        _
      %v521 = vld [vmem:[%s10] sm:$0xff]
      %v522 = vld [vmem:[%s10 + $0x8] sm:$0xff]
      %v523 = vld [vmem:[%s452] sm:$0x3f]
      %v524 = vpack.c.bf16 %v522, %v521
      %v525 = vld [vmem:[%s426] sm:$0xf]
      %v526 = vld [vmem:[%s426 + $0x4] sm:$0xf]
      %v527 = vld [vmem:[%s426 + $0x8] sm:$0xf]
      %v528 = vld [vmem:[%s426 + $0xc] sm:$0xf]
      %v529 = vld [vmem:[%s430] sm:$0x1]
      %v531 = vperm.slane %v529, 0
      %v537 = vunpack.c.l.b16 %v525
      %v538 = vunpack.c.l.b16 %v526
      %v539 = vunpack.c.l.b16 %v527
      %v540 = vunpack.c.l.b16 %v528
      %v541 = vpack.c.b16 %v538, %v537
      %v542 = vpack.c.b16 %v540, %v539
      %vm545 = vcmask 261120
      %v547 = vsel %vm545, %v524, 0
      %549 = vmatpush.bf16.msra.mxu0 0
      %550 = vmatpush.bf16.msra.mxu0 0
      %551 = vmatpush.bf16.msra.mxu0 0
      %552 = vmatpush.bf16.msra.mxu0 0
      %553 = vmatpush.bf16.msra.mxu0 0
      %554 = vmatpush.bf16.msra.mxu0 0
      %555 = vmatpush.bf16.msra.mxu0 %v542
      %556 = vmatpush.bf16.msra.mxu0 %v541
      %557 = vmatmul.bf16.gmra.mxu0 %v547
      %v558 = vpop.f32.mrf.mxu0
      %v559 = vadd.f32 %v531, %v558
      %v560 = vpop.f32.mrf.mxu0
      %v561 = vadd.f32 %v531, %v560
      %562 = vdwg.mxu0
      %s563 = scalar_lea.vmem %s426, 16
      %v564 = vld [vmem:[%s563] sm:$0xf]
      %v565 = vld [vmem:[%s563 + $0x4] sm:$0xf]
      %v566 = vld [vmem:[%s563 + $0x8] sm:$0xf]
      %v567 = vld [vmem:[%s563 + $0xc] sm:$0xf]
      %s568 = scalar_lea.vmem %s430, 1
      %v569 = vld [vmem:[%s568] sm:$0x1]
      %v571 = vperm.slane %v569, 0
      %v577 = vunpack.c.l.b16 %v564
      %v578 = vunpack.c.l.b16 %v565
      %v579 = vunpack.c.l.b16 %v566
      %v580 = vunpack.c.l.b16 %v567
      %v581 = vpack.c.b16 %v578, %v577
      %v582 = vpack.c.b16 %v580, %v579
      %585 = vmatpush.bf16.msra.mxu0 0
      %586 = vmatpush.bf16.msra.mxu0 0
      %587 = vmatpush.bf16.msra.mxu0 0
      %588 = vmatpush.bf16.msra.mxu0 0
      %589 = vmatpush.bf16.msra.mxu0 0
      %590 = vmatpush.bf16.msra.mxu0 0
      %591 = vmatpush.bf16.msra.mxu0 %v582
      %592 = vmatpush.bf16.msra.mxu0 %v581
      %593 = vmatmul.bf16.gmra.mxu0 %v547
      %v594 = vpop.f32.mrf.mxu0
      %v595 = vadd.f32 %v571, %v594
      %v596 = vpop.f32.mrf.mxu0
      %v597 = vadd.f32 %v571, %v596
      %598 = vdwg.mxu0
      %s599 = scalar_lea.vmem %s426, 32
      %v600 = vld [vmem:[%s599] sm:$0xf]
      %v601 = vld [vmem:[%s599 + $0x4] sm:$0xf]
      %v602 = vld [vmem:[%s599 + $0x8] sm:$0xf]
      %v603 = vld [vmem:[%s599 + $0xc] sm:$0xf]
      %s604 = scalar_lea.vmem %s430, 2
      %v605 = vld [vmem:[%s604] sm:$0x1]
      %v607 = vperm.slane %v605, 0
      %v613 = vunpack.c.l.b16 %v600
      %v614 = vunpack.c.l.b16 %v601
      %v615 = vunpack.c.l.b16 %v602
      %v616 = vunpack.c.l.b16 %v603
      %v617 = vpack.c.b16 %v614, %v613
      %v618 = vpack.c.b16 %v616, %v615
      %621 = vmatpush.bf16.msra.mxu0 0
      %622 = vmatpush.bf16.msra.mxu0 0
      %623 = vmatpush.bf16.msra.mxu0 0
      %624 = vmatpush.bf16.msra.mxu0 0
      %625 = vmatpush.bf16.msra.mxu0 0
      %626 = vmatpush.bf16.msra.mxu0 0
      %627 = vmatpush.bf16.msra.mxu0 %v618
      %628 = vmatpush.bf16.msra.mxu0 %v617
      %629 = vmatmul.bf16.gmra.mxu0 %v547
      %v630 = vpop.f32.mrf.mxu0
      %v631 = vadd.f32 %v607, %v630
      %v632 = vpop.f32.mrf.mxu0
      %v633 = vadd.f32 %v607, %v632
      %634 = vdwg.mxu0
      %v635 = vpack.c.bf16 %v597, %v595
      %v636 = vpack.c.bf16 %v633, %v631
      %v637 = vld [vmem:[%s1] sm:$0xff]
      %v638 = vld [vmem:[%s1 + $0x8] sm:$0xff]
      %v639 = vlaneseq
      %v640 = vand.u32 %v639, 127
      %vm641 = vcmp.ge.s32.totalorder %v640, 0
      %vm642 = vcmp.lt.s32.totalorder %v640, 8
      %vm643 = vmand %vm641, %vm642
      %v644 = vsel %vm643, 1, 0
      %v645 = vcvt.s32.f32 %v644
      %v646 = vmul.f32 %v559, %v645
      %v647 = vmul.f32 %v561, %v645
      %v648 = vpack.c.bf16 %v647, %v646
      %v650 = vsel %vm545, %v648, 0
      %v653 = vsel %vm545, %v635, 0
      %655 = vmatpush.bf16.xpose.msra.mxu0 0
      %656 = vmatpush.bf16.xpose.msra.mxu0 0
      %657 = vmatpush.bf16.xpose.msra.mxu0 0
      %658 = vmatpush.bf16.xpose.msra.mxu0 0
      %659 = vmatpush.bf16.xpose.msra.mxu0 0
      %660 = vmatpush.bf16.xpose.msra.mxu0 0
      %661 = vmatpush.bf16.xpose.msra.mxu0 0
      %662 = vmatpush.bf16.xpose.msra.mxu0 %v653
      %663 = vmatmul.bf16.gmra.mxu0 %v650
      %v664 = vpop.f32.mrf.mxu0
      %v665 = vadd.f32 %v637, %v664
      %v666 = vpop.f32.mrf.mxu0
      %v667 = vadd.f32 %v638, %v666
      %668 = vdwg.mxu0
      %vm669 = vcmask 130048
      %v670 = vsel %vm669, %v665, -inf
      %671 = vmax.xlane.f32.xlu0 %v670
      %v672 = vpop.xlane.xlu0 %671
      %v673 = vsel %vm669, %v667, -inf
      %674 = vmax.xlane.f32.xlu0 %v673
      %v675 = vpop.xlane.xlu0 %674
      %v676 = vsub.f32 %v665, %v672
      %v677 = vsub.f32 %v667, %v675
      %v678 = vmul.f32 %v676, 1.442695
      %v679 = vpow.pop %v678
      %v680 = vmul.f32 %v677, 1.442695
      %v681 = vpow.pop %v680
      %v682 = vsel %vm669, %v679, 0.0
      %683 = vadd.xlane.f32.xlu0 %v682
      %v684 = vpop.xlane.xlu0 %683
      %v685 = vsel %vm669, %v681, 0.0
      %686 = vadd.xlane.f32.xlu0 %v685
      %v687 = vpop.xlane.xlu0 %686
      %v688 = vrcp.pop %v684
      %v689 = vmul.f32 %v684, %v688
      %v690 = vsub.f32 1.0, %v689
      %v691 = vmul.f32 %v688, %v690
      %v692 = vadd.f32 %v688, %v691
      %vm693 = vweird.f32 %v684
      %vm694 = vweird.f32 %v688
      %vm695 = vmor %vm693, %vm694
      %v696 = vsel %vm695, %v688, %v692
      %v697 = vand.u32 2147483647, %v684
      %vm698 = vcmp.eq.f32.partialorder %v697, 8.507059e+37
      %v699 = vand.u32 %v684, 2147483648
      %v700 = vor.u32 1.1754944e-38, %v699
      %v701 = vsel %vm698, %v700, %v696
      %v702 = vmul.f32 %v679, %v701
      %v703 = vrcp.pop %v687
      %v704 = vmul.f32 %v687, %v703
      %v705 = vsub.f32 1.0, %v704
      %v706 = vmul.f32 %v703, %v705
      %v707 = vadd.f32 %v703, %v706
      %vm708 = vweird.f32 %v687
      %vm709 = vweird.f32 %v703
      %vm710 = vmor %vm708, %vm709
      %v711 = vsel %vm710, %v703, %v707
      %v712 = vand.u32 2147483647, %v687
      %vm713 = vcmp.eq.f32.partialorder %v712, 8.507059e+37
      %v714 = vand.u32 %v687, 2147483648
      %v715 = vor.u32 1.1754944e-38, %v714
      %v716 = vsel %vm713, %v715, %v711
      %v717 = vmul.f32 %v681, %v716
      %v718 = vpack.c.bf16 %v717, %v702
      %v720 = vsel %vm669, %v718, 0
      %722 = vmatpush.bf16.msra.mxu0 0
      %723 = vmatpush.bf16.msra.mxu0 0
      %724 = vmatpush.bf16.msra.mxu0 0
      %725 = vmatpush.bf16.msra.mxu0 0
      %726 = vmatpush.bf16.msra.mxu0 0
      %727 = vmatpush.bf16.msra.mxu0 0
      %728 = vmatpush.bf16.msra.mxu0 0
      %729 = vmatpush.bf16.msra.mxu0 %v636
      %730 = vmatmul.bf16.gmra.mxu0 %v720
      %v731 = vpop.f32.mrf.mxu0
      %v732 = vadd.f32 0.0, %v731
      %v733 = vpop.f32.mrf.mxu0
      %v734 = vadd.f32 0.0, %v733
      %735 = vdwg.mxu0
      %v736 = vmul.f32 %v732, %v645
      %v737 = vmul.f32 %v734, %v645
      %v738 = vadd.f32 %v736, 0.0
      %v739 = vadd.f32 %v737, 0.0
      %vm740 = vcmp.ge.s32.totalorder %v640, 8
      %vm741 = vcmp.lt.s32.totalorder %v640, 16
      %vm742 = vmand %vm740, %vm741
      %v743 = vsel %vm742, 1, 0
      %v744 = vcvt.s32.f32 %v743
      %v745 = vmul.f32 %v559, %v744
      %v746 = vmul.f32 %v561, %v744
      %v747 = vpack.c.bf16 %v746, %v745
      %v749 = vsel %vm545, %v747, 0
      %751 = vmatpush.bf16.xpose.msra.mxu0 0
      %752 = vmatpush.bf16.xpose.msra.mxu0 0
      %753 = vmatpush.bf16.xpose.msra.mxu0 0
      %754 = vmatpush.bf16.xpose.msra.mxu0 0
      %755 = vmatpush.bf16.xpose.msra.mxu0 0
      %756 = vmatpush.bf16.xpose.msra.mxu0 0
      %757 = vmatpush.bf16.xpose.msra.mxu0 0
      %758 = vmatpush.bf16.xpose.msra.mxu0 %v653
      %759 = vmatmul.bf16.gmra.mxu0 %v749
      %v760 = vpop.f32.mrf.mxu0
      %v761 = vadd.f32 %v637, %v760
      %v762 = vpop.f32.mrf.mxu0
      %v763 = vadd.f32 %v638, %v762
      %764 = vdwg.mxu0
      %v765 = vsel %vm669, %v761, -inf
      %766 = vmax.xlane.f32.xlu0 %v765
      %v767 = vpop.xlane.xlu0 %766
      %v768 = vsel %vm669, %v763, -inf
      %769 = vmax.xlane.f32.xlu0 %v768
      %v770 = vpop.xlane.xlu0 %769
      %v771 = vsub.f32 %v761, %v767
      %v772 = vsub.f32 %v763, %v770
      %v773 = vmul.f32 %v771, 1.442695
      %v774 = vpow.pop %v773
      %v775 = vmul.f32 %v772, 1.442695
      %v776 = vpow.pop %v775
      %v777 = vsel %vm669, %v774, 0.0
      %778 = vadd.xlane.f32.xlu0 %v777
      %v779 = vpop.xlane.xlu0 %778
      %v780 = vsel %vm669, %v776, 0.0
      %781 = vadd.xlane.f32.xlu0 %v780
      %v782 = vpop.xlane.xlu0 %781
      %v783 = vrcp.pop %v779
      %v784 = vmul.f32 %v779, %v783
      %v785 = vsub.f32 1.0, %v784
      %v786 = vmul.f32 %v783, %v785
      %v787 = vadd.f32 %v783, %v786
      %vm788 = vweird.f32 %v779
      %vm789 = vweird.f32 %v783
      %vm790 = vmor %vm788, %vm789
      %v791 = vsel %vm790, %v783, %v787
      %v792 = vand.u32 2147483647, %v779
      %vm793 = vcmp.eq.f32.partialorder %v792, 8.507059e+37
      %v794 = vand.u32 %v779, 2147483648
      %v795 = vor.u32 1.1754944e-38, %v794
      %v796 = vsel %vm793, %v795, %v791
      %v797 = vmul.f32 %v774, %v796
      %v798 = vrcp.pop %v782
      %v799 = vmul.f32 %v782, %v798
      %v800 = vsub.f32 1.0, %v799
      %v801 = vmul.f32 %v798, %v800
      %v802 = vadd.f32 %v798, %v801
      %vm803 = vweird.f32 %v782
      %vm804 = vweird.f32 %v798
      %vm805 = vmor %vm803, %vm804
      %v806 = vsel %vm805, %v798, %v802
      %v807 = vand.u32 2147483647, %v782
      %vm808 = vcmp.eq.f32.partialorder %v807, 8.507059e+37
      %v809 = vand.u32 %v782, 2147483648
      %v810 = vor.u32 1.1754944e-38, %v809
      %v811 = vsel %vm808, %v810, %v806
      %v812 = vmul.f32 %v776, %v811
      %v813 = vpack.c.bf16 %v812, %v797
      %v815 = vsel %vm669, %v813, 0
      %817 = vmatpush.bf16.msra.mxu0 0
      %818 = vmatpush.bf16.msra.mxu0 0
      %819 = vmatpush.bf16.msra.mxu0 0
      %820 = vmatpush.bf16.msra.mxu0 0
      %821 = vmatpush.bf16.msra.mxu0 0
      %822 = vmatpush.bf16.msra.mxu0 0
      %823 = vmatpush.bf16.msra.mxu0 0
      %824 = vmatpush.bf16.msra.mxu0 %v636
      %825 = vmatmul.bf16.gmra.mxu0 %v815
      %v826 = vpop.f32.mrf.mxu0
      %v827 = vadd.f32 0.0, %v826
      %v828 = vpop.f32.mrf.mxu0
      %v829 = vadd.f32 0.0, %v828
      %830 = vdwg.mxu0
      %v831 = vmul.f32 %v827, %v744
      %v832 = vmul.f32 %v829, %v744
      %v833 = vadd.f32 %v738, %v831
      %v834 = vadd.f32 %v739, %v832
      %vm835 = vcmp.ge.s32.totalorder %v640, 16
      %vm836 = vcmp.lt.s32.totalorder %v640, 24
      %vm837 = vmand %vm835, %vm836
      %v838 = vsel %vm837, 1, 0
      %v839 = vcvt.s32.f32 %v838
      %v840 = vmul.f32 %v559, %v839
      %v841 = vmul.f32 %v561, %v839
      %v842 = vpack.c.bf16 %v841, %v840
      %v844 = vsel %vm545, %v842, 0
      %846 = vmatpush.bf16.xpose.msra.mxu0 0
      %847 = vmatpush.bf16.xpose.msra.mxu0 0
      %848 = vmatpush.bf16.xpose.msra.mxu0 0
      %849 = vmatpush.bf16.xpose.msra.mxu0 0
      %850 = vmatpush.bf16.xpose.msra.mxu0 0
      %851 = vmatpush.bf16.xpose.msra.mxu0 0
      %852 = vmatpush.bf16.xpose.msra.mxu0 0
      %853 = vmatpush.bf16.xpose.msra.mxu0 %v653
      %854 = vmatmul.bf16.gmra.mxu0 %v844
      %v855 = vpop.f32.mrf.mxu0
      %v856 = vadd.f32 %v637, %v855
      %v857 = vpop.f32.mrf.mxu0
      %v858 = vadd.f32 %v638, %v857
      %859 = vdwg.mxu0
      %v860 = vsel %vm669, %v856, -inf
      %861 = vmax.xlane.f32.xlu0 %v860
      %v862 = vpop.xlane.xlu0 %861
      %v863 = vsel %vm669, %v858, -inf
      %864 = vmax.xlane.f32.xlu0 %v863
      %v865 = vpop.xlane.xlu0 %864
      %v866 = vsub.f32 %v856, %v862
      %v867 = vsub.f32 %v858, %v865
      %v868 = vmul.f32 %v866, 1.442695
      %v869 = vpow.pop %v868
      %v870 = vmul.f32 %v867, 1.442695
      %v871 = vpow.pop %v870
      %v872 = vsel %vm669, %v869, 0.0
      %873 = vadd.xlane.f32.xlu0 %v872
      %v874 = vpop.xlane.xlu0 %873
      %v875 = vsel %vm669, %v871, 0.0
      %876 = vadd.xlane.f32.xlu0 %v875
      %v877 = vpop.xlane.xlu0 %876
      %v878 = vrcp.pop %v874
      %v879 = vmul.f32 %v874, %v878
      %v880 = vsub.f32 1.0, %v879
      %v881 = vmul.f32 %v878, %v880
      %v882 = vadd.f32 %v878, %v881
      %vm883 = vweird.f32 %v874
      %vm884 = vweird.f32 %v878
      %vm885 = vmor %vm883, %vm884
      %v886 = vsel %vm885, %v878, %v882
      %v887 = vand.u32 2147483647, %v874
      %vm888 = vcmp.eq.f32.partialorder %v887, 8.507059e+37
      %v889 = vand.u32 %v874, 2147483648
      %v890 = vor.u32 1.1754944e-38, %v889
      %v891 = vsel %vm888, %v890, %v886
      %v892 = vmul.f32 %v869, %v891
      %v893 = vrcp.pop %v877
      %v894 = vmul.f32 %v877, %v893
      %v895 = vsub.f32 1.0, %v894
      %v896 = vmul.f32 %v893, %v895
      %v897 = vadd.f32 %v893, %v896
      %vm898 = vweird.f32 %v877
      %vm899 = vweird.f32 %v893
      %vm900 = vmor %vm898, %vm899
      %v901 = vsel %vm900, %v893, %v897
      %v902 = vand.u32 2147483647, %v877
      %vm903 = vcmp.eq.f32.partialorder %v902, 8.507059e+37
      %v904 = vand.u32 %v877, 2147483648
      %v905 = vor.u32 1.1754944e-38, %v904
      %v906 = vsel %vm903, %v905, %v901
      %v907 = vmul.f32 %v871, %v906
      %v908 = vpack.c.bf16 %v907, %v892
      %v910 = vsel %vm669, %v908, 0
      %912 = vmatpush.bf16.msra.mxu0 0
      %913 = vmatpush.bf16.msra.mxu0 0
      %914 = vmatpush.bf16.msra.mxu0 0
      %915 = vmatpush.bf16.msra.mxu0 0
      %916 = vmatpush.bf16.msra.mxu0 0
      %917 = vmatpush.bf16.msra.mxu0 0
      %918 = vmatpush.bf16.msra.mxu0 0
      %919 = vmatpush.bf16.msra.mxu0 %v636
      %920 = vmatmul.bf16.gmra.mxu0 %v910
      %v921 = vpop.f32.mrf.mxu0
      %v922 = vadd.f32 0.0, %v921
      %v923 = vpop.f32.mrf.mxu0
      %v924 = vadd.f32 0.0, %v923
      %925 = vdwg.mxu0
      %v926 = vmul.f32 %v922, %v839
      %v927 = vmul.f32 %v924, %v839
      %v928 = vadd.f32 %v833, %v926
      %v929 = vadd.f32 %v834, %v927
      %vm930 = vcmp.ge.s32.totalorder %v640, 24
      %vm931 = vcmp.lt.s32.totalorder %v640, 32
      %vm932 = vmand %vm930, %vm931
      %v933 = vsel %vm932, 1, 0
      %v934 = vcvt.s32.f32 %v933
      %v935 = vmul.f32 %v559, %v934
      %v936 = vmul.f32 %v561, %v934
      %v937 = vpack.c.bf16 %v936, %v935
      %v939 = vsel %vm545, %v937, 0
      %941 = vmatpush.bf16.xpose.msra.mxu0 0
      %942 = vmatpush.bf16.xpose.msra.mxu0 0
      %943 = vmatpush.bf16.xpose.msra.mxu0 0
      %944 = vmatpush.bf16.xpose.msra.mxu0 0
      %945 = vmatpush.bf16.xpose.msra.mxu0 0
      %946 = vmatpush.bf16.xpose.msra.mxu0 0
      %947 = vmatpush.bf16.xpose.msra.mxu0 0
      %948 = vmatpush.bf16.xpose.msra.mxu0 %v653
      %949 = vmatmul.bf16.gmra.mxu0 %v939
      %v950 = vpop.f32.mrf.mxu0
      %v951 = vadd.f32 %v637, %v950
      %v952 = vpop.f32.mrf.mxu0
      %v953 = vadd.f32 %v638, %v952
      %954 = vdwg.mxu0
      %v955 = vsel %vm669, %v951, -inf
      %956 = vmax.xlane.f32.xlu0 %v955
      %v957 = vpop.xlane.xlu0 %956
      %v958 = vsel %vm669, %v953, -inf
      %959 = vmax.xlane.f32.xlu0 %v958
      %v960 = vpop.xlane.xlu0 %959
      %v961 = vsub.f32 %v951, %v957
      %v962 = vsub.f32 %v953, %v960
      %v963 = vmul.f32 %v961, 1.442695
      %v964 = vpow.pop %v963
      %v965 = vmul.f32 %v962, 1.442695
      %v966 = vpow.pop %v965
      %v967 = vsel %vm669, %v964, 0.0
      %968 = vadd.xlane.f32.xlu0 %v967
      %v969 = vpop.xlane.xlu0 %968
      %v970 = vsel %vm669, %v966, 0.0
      %971 = vadd.xlane.f32.xlu0 %v970
      %v972 = vpop.xlane.xlu0 %971
      %v973 = vrcp.pop %v969
      %v974 = vmul.f32 %v969, %v973
      %v975 = vsub.f32 1.0, %v974
      %v976 = vmul.f32 %v973, %v975
      %v977 = vadd.f32 %v973, %v976
      %vm978 = vweird.f32 %v969
      %vm979 = vweird.f32 %v973
      %vm980 = vmor %vm978, %vm979
      %v981 = vsel %vm980, %v973, %v977
      %v982 = vand.u32 2147483647, %v969
      %vm983 = vcmp.eq.f32.partialorder %v982, 8.507059e+37
      %v984 = vand.u32 %v969, 2147483648
      %v985 = vor.u32 1.1754944e-38, %v984
      %v986 = vsel %vm983, %v985, %v981
      %v987 = vmul.f32 %v964, %v986
      %v988 = vrcp.pop %v972
      %v989 = vmul.f32 %v972, %v988
      %v990 = vsub.f32 1.0, %v989
      %v991 = vmul.f32 %v988, %v990
      %v992 = vadd.f32 %v988, %v991
      %vm993 = vweird.f32 %v972
      %vm994 = vweird.f32 %v988
      %vm995 = vmor %vm993, %vm994
      %v996 = vsel %vm995, %v988, %v992
      %v997 = vand.u32 2147483647, %v972
      %vm998 = vcmp.eq.f32.partialorder %v997, 8.507059e+37
      %v999 = vand.u32 %v972, 2147483648
      %v1000 = vor.u32 1.1754944e-38, %v999
      %v1001 = vsel %vm998, %v1000, %v996
      %v1002 = vmul.f32 %v966, %v1001
      %v1003 = vpack.c.bf16 %v1002, %v987
      %v1005 = vsel %vm669, %v1003, 0
      %1007 = vmatpush.bf16.msra.mxu0 0
      %1008 = vmatpush.bf16.msra.mxu0 0
      %1009 = vmatpush.bf16.msra.mxu0 0
      %1010 = vmatpush.bf16.msra.mxu0 0
      %1011 = vmatpush.bf16.msra.mxu0 0
      %1012 = vmatpush.bf16.msra.mxu0 0
      %1013 = vmatpush.bf16.msra.mxu0 0
      %1014 = vmatpush.bf16.msra.mxu0 %v636
      %1015 = vmatmul.bf16.gmra.mxu0 %v1005
      %v1016 = vpop.f32.mrf.mxu0
      %v1017 = vadd.f32 0.0, %v1016
      %v1018 = vpop.f32.mrf.mxu0
      %v1019 = vadd.f32 0.0, %v1018
      %1020 = vdwg.mxu0
      %v1021 = vmul.f32 %v1017, %v934
      %v1022 = vmul.f32 %v1019, %v934
      %v1023 = vadd.f32 %v928, %v1021
      %v1024 = vadd.f32 %v929, %v1022
      %v1025 = vpack.c.bf16 %v1024, %v1023
      %v1026 = vld [vmem:[%s435] sm:$0xf]
      %v1027 = vld [vmem:[%s435 + $0x4] sm:$0xf]
      %v1028 = vld [vmem:[%s435 + $0x8] sm:$0xf]
      %v1029 = vld [vmem:[%s435 + $0xc] sm:$0xf]
      %v1030 = vperm.slane %v523, 0
      %v1035 = vunpack.c.l.b16 %v1026
      %v1036 = vunpack.c.l.b16 %v1027
      %v1037 = vunpack.c.l.b16 %v1028
      %v1038 = vunpack.c.l.b16 %v1029
      %v1039 = vpack.c.b16 %v1036, %v1035
      %v1040 = vpack.c.b16 %v1038, %v1037
      %v1044 = vsel %vm545, %v1025, 0
      %1046 = vmatpush.bf16.msra.mxu0 0
      %1047 = vmatpush.bf16.msra.mxu0 0
      %1048 = vmatpush.bf16.msra.mxu0 0
      %1049 = vmatpush.bf16.msra.mxu0 0
      %1050 = vmatpush.bf16.msra.mxu0 0
      %1051 = vmatpush.bf16.msra.mxu0 0
      %1052 = vmatpush.bf16.msra.mxu0 %v1040
      %1053 = vmatpush.bf16.msra.mxu0 %v1039
      %1054 = vmatmul.bf16.gmra.mxu0 %v1044
      %v1055 = vpop.f32.mrf.mxu0
      %v1056 = vadd.f32 %v1030, %v1055
      %v1057 = vpop.f32.mrf.mxu0
      %v1058 = vadd.f32 %v1030, %v1057
      %1059 = vdwg.mxu0
      %v1060 = vadd.f32 %v1056, %v521
      %v1061 = vadd.f32 %v1058, %v522
      %v1062 = vsel %vm545, %v1060, 0.0
      %1063 = vadd.xlane.f32.xlu0 %v1062
      %v1064 = vpop.xlane.xlu0 %1063
      %v1065 = vsel %vm545, %v1061, 0.0
      %1066 = vadd.xlane.f32.xlu0 %v1065
      %v1067 = vpop.xlane.xlu0 %1066
      %v1068 = vrcp.pop 32.0
      %v1069 = vmul.f32 32.0, %v1068
      %v1070 = vsub.f32 1.0, %v1069
      %v1071 = vmul.f32 %v1068, %v1070
      %v1072 = vadd.f32 %v1068, %v1071
      %vm1073 = vweird.f32 %v1068
      %v1074 = vsel %vm1073, %v1068, %v1072
      %v1075 = vmul.f32 %v1064, %v1074
      %v1076 = vmul.f32 %v1067, %v1074
      %v1077 = vsub.f32 %v1060, %v1075
      %v1078 = vsub.f32 %v1061, %v1076
      %v1079 = vmul.f32 %v1077, %v1077
      %v1080 = vmul.f32 %v1078, %v1078
      %v1081 = vsel %vm545, %v1079, 0.0
      %1082 = vadd.xlane.f32.xlu0 %v1081
      %v1083 = vpop.xlane.xlu0 %1082
      %v1084 = vsel %vm545, %v1080, 0.0
      %1085 = vadd.xlane.f32.xlu0 %v1084
      %v1086 = vpop.xlane.xlu0 %1085
      %v1087 = vmul.f32 %v1083, %v1074
      %v1088 = vmul.f32 %v1086, %v1074
      %v1089 = vadd.f32 %v1087, 1e-12
      %v1090 = vadd.f32 %v1088, 1e-12
      %v1091 = vrsqrt.pop %v1089
      %v1092 = vmul.f32 %v1091, %v1089
      %v1093 = vmul.f32 %v1092, %v1091
      %v1094 = vmul.f32 0.5, %v1093
      %v1095 = vsub.f32 1.5, %v1094
      %v1096 = vmul.f32 %v1091, %v1095
      %vm1097 = vweird.f32 %v1089
      %vm1098 = vweird.f32 %v1091
      %vm1099 = vmor %vm1097, %vm1098
      %v1100 = vsel %vm1099, %v1091, %v1096
      %v1101 = vrsqrt.pop %v1090
      %v1102 = vmul.f32 %v1101, %v1090
      %v1103 = vmul.f32 %v1102, %v1101
      %v1104 = vmul.f32 0.5, %v1103
      %v1105 = vsub.f32 1.5, %v1104
      %v1106 = vmul.f32 %v1101, %v1105
      %vm1107 = vweird.f32 %v1090
      %vm1108 = vweird.f32 %v1101
      %vm1109 = vmor %vm1107, %vm1108
      %v1110 = vsel %vm1109, %v1101, %v1106
      %v1111 = vmul.f32 %v1077, %v1100
      %v1112 = vmul.f32 %v1078, %v1110
      %v1113 = vperm.slane %v523, 1
      %v1114 = vmul.f32 %v1111, %v1113
      %v1115 = vmul.f32 %v1112, %v1113
      %v1116 = vperm.slane %v523, 2
      %v1117 = vadd.f32 %v1114, %v1116
      %v1118 = vadd.f32 %v1115, %v1116
      %v1119 = vpack.c.bf16 %v1118, %v1117
      %v1120 = vld [vmem:[%s440] sm:$0xf]
      %v1121 = vld [vmem:[%s440 + $0x4] sm:$0xf]
      %v1122 = vld [vmem:[%s440 + $0x8] sm:$0xf]
      %v1123 = vld [vmem:[%s440 + $0xc] sm:$0xf]
      %v1124 = vld [vmem:[%s443] sm:$0x1]
      %v1126 = vperm.slane %v1124, 0
      %v1132 = vunpack.c.l.b16 %v1120
      %v1133 = vunpack.c.l.b16 %v1121
      %v1134 = vunpack.c.l.b16 %v1122
      %v1135 = vunpack.c.l.b16 %v1123
      %v1136 = vpack.c.b16 %v1133, %v1132
      %v1137 = vpack.c.b16 %v1135, %v1134
      %v1141 = vsel %vm545, %v1119, 0
      %1143 = vmatpush.bf16.msra.mxu0 0
      %1144 = vmatpush.bf16.msra.mxu0 0
      %1145 = vmatpush.bf16.msra.mxu0 0
      %1146 = vmatpush.bf16.msra.mxu0 0
      %1147 = vmatpush.bf16.msra.mxu0 0
      %1148 = vmatpush.bf16.msra.mxu0 0
      %1149 = vmatpush.bf16.msra.mxu0 %v1137
      %1150 = vmatpush.bf16.msra.mxu0 %v1136
      %1151 = vmatmul.bf16.gmra.mxu0 %v1141
      %v1152 = vpop.f32.mrf.mxu0
      %v1153 = vadd.f32 %v1126, %v1152
      %v1154 = vpop.f32.mrf.mxu0
      %v1155 = vadd.f32 %v1126, %v1154
      %1156 = vdwg.mxu0
      %v1157 = vmul.f32 %v1153, 0.5
      %v1158 = vmul.f32 %v1155, 0.5
      %v1159 = vmul.f32 %v1153, 0.044715
      %v1160 = vmul.f32 %v1155, 0.044715
      %v1161 = vmul.f32 %v1159, %v1153
      %v1162 = vmul.f32 %v1160, %v1155
      %v1163 = vmul.f32 %v1161, %v1153
      %v1164 = vmul.f32 %v1162, %v1155
      %v1165 = vadd.f32 %v1153, %v1163
      %v1166 = vadd.f32 %v1155, %v1164
      %v1167 = vmul.f32 %v1165, 0.7978846
      %v1168 = vmul.f32 %v1166, 0.7978846
      %v1169 = vtanh.pop %v1167
      %v1170 = vtanh.pop %v1168
      %v1171 = vadd.f32 %v1169, 1.0
      %v1172 = vadd.f32 %v1170, 1.0
      %v1173 = vmul.f32 %v1157, %v1171
      %v1174 = vmul.f32 %v1158, %v1172
      %v1175 = vpack.c.bf16 %v1174, %v1173
      %v1176 = vld [vmem:[%s448] sm:$0xf]
      %v1177 = vld [vmem:[%s448 + $0x4] sm:$0xf]
      %v1178 = vld [vmem:[%s448 + $0x8] sm:$0xf]
      %v1179 = vld [vmem:[%s448 + $0xc] sm:$0xf]
      %v1180 = vld [vmem:[%s448 + $0x10] sm:$0xf]
      %v1181 = vld [vmem:[%s448 + $0x14] sm:$0xf]
      %v1182 = vld [vmem:[%s448 + $0x18] sm:$0xf]
      %v1183 = vld [vmem:[%s448 + $0x1c] sm:$0xf]
      %v1184 = vperm.slane %v523, 3
      %v1193 = vunpack.c.l.b16 %v1176
      %v1194 = vunpack.c.l.b16 %v1177
      %v1195 = vunpack.c.l.b16 %v1178
      %v1196 = vunpack.c.l.b16 %v1179
      %v1197 = vunpack.c.l.b16 %v1180
      %v1198 = vunpack.c.l.b16 %v1181
      %v1199 = vunpack.c.l.b16 %v1182
      %v1200 = vunpack.c.l.b16 %v1183
      %v1201 = vpack.c.b16 %v1194, %v1193
      %v1202 = vpack.c.b16 %v1196, %v1195
      %v1203 = vpack.c.b16 %v1198, %v1197
      %v1204 = vpack.c.b16 %v1200, %v1199
      %vm1209 = vcmask 523264
      %v1211 = vsel %vm1209, %v1175, 0
      %1213 = vmatpush.bf16.msra.mxu0 0
      %1214 = vmatpush.bf16.msra.mxu0 0
      %1215 = vmatpush.bf16.msra.mxu0 0
      %1216 = vmatpush.bf16.msra.mxu0 0
      %1217 = vmatpush.bf16.msra.mxu0 %v1204
      %1218 = vmatpush.bf16.msra.mxu0 %v1203
      %1219 = vmatpush.bf16.msra.mxu0 %v1202
      %1220 = vmatpush.bf16.msra.mxu0 %v1201
      %1221 = vmatmul.bf16.gmra.mxu0 %v1211
      %v1222 = vpop.f32.mrf.mxu0
      %v1223 = vadd.f32 %v1184, %v1222
      %v1224 = vpop.f32.mrf.mxu0
      %v1225 = vadd.f32 %v1184, %v1224
      %1226 = vdwg.mxu0
      %v1227 = vadd.f32 %v1223, %v1117
      %v1228 = vadd.f32 %v1225, %v1118
      %v1229 = vsel %vm545, %v1227, 0.0
      %1230 = vadd.xlane.f32.xlu0 %v1229
      %v1231 = vpop.xlane.xlu0 %1230
      %v1232 = vsel %vm545, %v1228, 0.0
      %1233 = vadd.xlane.f32.xlu0 %v1232
      %v1234 = vpop.xlane.xlu0 %1233
      %v1235 = vmul.f32 %v1231, %v1074
      %v1236 = vmul.f32 %v1234, %v1074
      %v1237 = vsub.f32 %v1227, %v1235
      %v1238 = vsub.f32 %v1228, %v1236
      %v1239 = vmul.f32 %v1237, %v1237
      %v1240 = vmul.f32 %v1238, %v1238
      %v1241 = vsel %vm545, %v1239, 0.0
      %1242 = vadd.xlane.f32.xlu0 %v1241
      %v1243 = vpop.xlane.xlu0 %1242
      %v1244 = vsel %vm545, %v1240, 0.0
      %1245 = vadd.xlane.f32.xlu0 %v1244
      %v1246 = vpop.xlane.xlu0 %1245
      %v1247 = vmul.f32 %v1243, %v1074
      %v1248 = vmul.f32 %v1246, %v1074
      %v1249 = vadd.f32 %v1247, 1e-12
      %v1250 = vadd.f32 %v1248, 1e-12
      %v1251 = vrsqrt.pop %v1249
      %v1252 = vmul.f32 %v1251, %v1249
      %v1253 = vmul.f32 %v1252, %v1251
      %v1254 = vmul.f32 0.5, %v1253
      %v1255 = vsub.f32 1.5, %v1254
      %v1256 = vmul.f32 %v1251, %v1255
      %vm1257 = vweird.f32 %v1249
      %vm1258 = vweird.f32 %v1251
      %vm1259 = vmor %vm1257, %vm1258
      %v1260 = vsel %vm1259, %v1251, %v1256
      %v1261 = vrsqrt.pop %v1250
      %v1262 = vmul.f32 %v1261, %v1250
      %v1263 = vmul.f32 %v1262, %v1261
      %v1264 = vmul.f32 0.5, %v1263
      %v1265 = vsub.f32 1.5, %v1264
      %v1266 = vmul.f32 %v1261, %v1265
      %vm1267 = vweird.f32 %v1250
      %vm1268 = vweird.f32 %v1261
      %vm1269 = vmor %vm1267, %vm1268
      %v1270 = vsel %vm1269, %v1261, %v1266
      %v1271 = vmul.f32 %v1237, %v1260
      %v1272 = vmul.f32 %v1238, %v1270
      %v1273 = vperm.slane %v523, 4
      %v1274 = vmul.f32 %v1271, %v1273
      %v1275 = vmul.f32 %v1272, %v1273
      %v1276 = vperm.slane %v523, 5
      %v1277 = vadd.f32 %v1274, %v1276
      %v1278 = vadd.f32 %v1275, %v1276
      %1279 = vst.msk [vmem:[%s10] sm:$0xff] %vm545, %v1277
      %1280 = vst.msk [vmem:[%s10 + $0x8] sm:$0xff] %vm545, %v1278
      // Predicated region
      $region65: #{_lambda_.2} parent=59 // pred_check
        %p1281 = pneg %p279
      $region66: #{_lambda_.2} parent=59 // pred_check_branch
        %1283 = sbr.rel (%p1281) target = $region68
      $region67: #{_lambda_.2} parent=59 // pred_region
        _
      $region68: #{_lambda_.2} parent=59 // pred_fallthru
        _
      // Predicated region
      $region69: #{_lambda_.2} parent=59 // pred_check
        %p1284 = pneg %p279
      $region70: #{_lambda_.2} parent=59 // pred_check_branch
        %1286 = sbr.rel (%p1284) target = $region72
      $region71: #{_lambda_.2} parent=59 // pred_region
        _
      $region72: #{_lambda_.2} parent=59 // pred_fallthru
        _
    $region60: #{_lambda_.2} parent=5 // pred_fallthru
      _
    %p1287 = scmp.le.s32.totalorder 2, %s16
    // Predicated region
    $region73: #{_lambda_.2} parent=5 // pred_check
      %p1288 = pneg %p1287
    $region74: #{_lambda_.2} parent=5 // pred_check_branch
      %1290 = sbr.rel (%p1288) target = $region76
    $region75: #{_lambda_.2} parent=5 // pred_region
      %s1291 = ssub.s32 %s16, 2
    $region76: #{_lambda_.2} parent=5 // pred_fallthru
      _
  $region6: #{_lambda_.2} parent=0 // loop_footer
    %s20 = sadd.s32 1, %s16
  $region7: #{_lambda_.2} parent=0 // loop_footer_branch
    %15 = sbr.rel target = $region3
  $region8: #{_lambda_.2} parent=0 // loop_exit
    _

</llo_original>
